<compile_context>
chip_gen: v5e
topology: v5e:2x2
jax: 0.10.0
libtpu: 0.0.40
codegen_flags: <defaults>
</compile_context>

<pallas_src>
import jax
import jax.numpy as jnp
from jax.experimental import pallas as pl
from jax.experimental.pallas import tpu as pltpu

D = 512  # fixed by nn.Linear(512, 512)


def _round_up(n, m):
    return ((n + m - 1) // m) * m


def image_mlp_kernel(x_ref, w1_ref, b1_ref, w2_ref, b2_ref, o_ref):
    # Fused f32 -> bf16 cast of the activation tile (no extra wrapper HBM pass).
    x = x_ref[...].astype(jnp.bfloat16)
    # fc1: bf16 x bf16 -> f32 accumulation on the MXU, bias + ReLU in f32,
    # then immediately drop to bf16 so the staging buffer / stores are half-width.
    h = jnp.dot(x, w1_ref[...], preferred_element_type=jnp.float32)
    h = jnp.maximum(h + b1_ref[...], 0.0).astype(jnp.bfloat16)
    # Dropout(p=0.3): identity in eval mode.
    # fc2 + bias, tanh (EUP slot), cast to the output dtype.
    y = jnp.dot(h, w2_ref[...], preferred_element_type=jnp.float32)
    o_ref[...] = jnp.tanh(y + b2_ref[...]).astype(o_ref.dtype)


def _resident_vmem_spec():
    # Whole operand placed once in VMEM (no blocking, no double-buffering).
    return pl.BlockSpec(memory_space=pltpu.MemorySpace.VMEM)


def _choose_bm(B, block_m):
    """Pick the batch tile: single full block for small B, big MXU-friendly
    multiples of 128 for large B, preferring tiles that divide B (no padding)."""
    if B <= block_m:
        return B  # one grid step; block == full array dim, no pad needed
    if B % block_m == 0:
        return block_m
    # Look for a >=128 multiple-of-128 tile that divides B to avoid pad+slice.
    cand = block_m - 128
    while cand >= 128:
        if B % cand == 0:
            return cand
        cand -= 128
    return block_m  # fall back to padding the last tile


def image_mlp(x, w1, b1, w2, b2, *, block_m=512):
    """Forward pass of ImageMlp.  x: (B, 512); weights stored as (in, out)."""
    B, d = x.shape
    assert d == D, f"feature dim must be {D}, got {d}"
    out_dtype = x.dtype

    # Weights as bf16 (MXU inputs), biases as f32 row vectors.  These are tiny
    # (0.5 MiB each) one-time casts; x is NOT cast here -- that is fused into
    # the kernel to avoid an extra HBM pass over the activations.
    w1b = jnp.asarray(w1, jnp.bfloat16)
    w2b = jnp.asarray(w2, jnp.bfloat16)
    b1f = jnp.asarray(b1, jnp.float32).reshape(1, D)
    b2f = jnp.asarray(b2, jnp.float32).reshape(1, D)

    bm = _choose_bm(B, block_m)
    Bp = _round_up(B, bm)
    xin = x
    if Bp != B:
        xin = jnp.pad(x, ((0, Bp - B), (0, 0)))  # only when no dividing tile exists
    grid = (Bp // bm,)

    out = pl.pallas_call(
        image_mlp_kernel,
        out_shape=jax.ShapeDtypeStruct((Bp, D), out_dtype),
        grid_spec=pltpu.PrefetchScalarGridSpec(
            num_scalar_prefetch=0,
            grid=grid,
            in_specs=[
                pl.BlockSpec((bm, D), lambda i: (i, 0)),  # x tile (pipelined)
                _resident_vmem_spec(),                    # W1 (resident, 1 copy)
                _resident_vmem_spec(),                    # b1
                _resident_vmem_spec(),                    # W2 (resident, 1 copy)
                _resident_vmem_spec(),                    # b2
            ],
            out_specs=pl.BlockSpec((bm, D), lambda i: (i, 0)),
        ),
        compiler_params=pltpu.CompilerParams(
            dimension_semantics=("parallel",)),
    )(xin, w1b, b1f, w2b, b2f)

    return out[:B] if Bp != B else out


def init_params(key):
    k1, k2, k3, k4 = jax.random.split(key, 4)
    bound = 1.0 / jnp.sqrt(D)
    # Stored as (in, out) == transpose of PyTorch's (out, in) weight.
    w1 = jax.random.uniform(k1, (D, D), jnp.float32, -bound, bound)
    b1 = jax.random.uniform(k2, (D,), jnp.float32, -bound, bound)
    w2 = jax.random.uniform(k3, (D, D), jnp.float32, -bound, bound)
    b2 = jax.random.uniform(k4, (D,), jnp.float32, -bound, bound)
    return w1, b1, w2, b2


if __name__ == "__main__":
    key = jax.random.PRNGKey(0)
    kx, kp = jax.random.split(key)
    w1, b1, w2, b2 = init_params(kp)

    def ref_fn(x):  # plain-JAX f32 reference (eval-mode dropout = identity)
        return jnp.tanh(jnp.maximum(x @ w1 + b1, 0.0) @ w2 + b2)

    # Small batches (single full block, no pad), plus small overrides that
    # exercise the multi-step grid and the pad-to-tile fallback paths.
    cases = [
        (16, {}),            # single block, bm = 16
        (12, {}),            # single block, bm = 12 (block == full dim)
        (8, {}),             # single block, bm = 8
        (256, {"block_m": 128}),  # grid = 2, no padding
        (320, {"block_m": 128}),  # no 128-multiple divisor -> pad path
    ]
    for B, kwargs in cases:
        x = jax.random.normal(jax.random.fold_in(kx, B), (B, D), jnp.float32)
        out = jax.block_until_ready(image_mlp(x, w1, b1, w2, b2, **kwargs))
        ref = ref_fn(x)
        assert out.shape == (B, D)
        assert out.dtype == x.dtype
        # bf16 matmul inputs with f32 accumulation -> loosened tolerance.
        err = float(jnp.max(jnp.abs(out - ref)))
        assert jnp.allclose(out, ref, atol=3e-2, rtol=3e-2), f"B={B} max err {err}"

    print("KERNEL_OK")
</pallas_src>

<mosaic_0001>
module attributes {stable_mosaic.version = 11 : i64} {
  func.func @image_mlp_kernel(%arg0: i32, %arg1: memref<16x512xf32, #tpu.memory_space<vmem>>, %arg2: memref<512x512xbf16, #tpu.memory_space<vmem>>, %arg3: memref<1x512xf32, #tpu.memory_space<vmem>>, %arg4: memref<512x512xbf16, #tpu.memory_space<vmem>>, %arg5: memref<1x512xf32, #tpu.memory_space<vmem>>, %arg6: memref<16x512xf32, #tpu.memory_space<vmem>>) attributes {dimension_semantics = [#tpu.dimension_semantics<parallel>], iteration_bounds = array<i64: 1>, scalar_prefetch = 0 : i64, scratch_operands = 0 : i64, tpu.core_type = #tpu.core_type<tc>, window_params = [{transform_indices = @transform_0, window_bounds = array<i64: 16, 512>}, {pipeline_mode = #tpu.pipeline_mode<synchronous>, transform_indices = @transform_1, window_bounds = array<i64: 512, 512>}, {pipeline_mode = #tpu.pipeline_mode<synchronous>, transform_indices = @transform_2, window_bounds = array<i64: 1, 512>}, {pipeline_mode = #tpu.pipeline_mode<synchronous>, transform_indices = @transform_3, window_bounds = array<i64: 512, 512>}, {pipeline_mode = #tpu.pipeline_mode<synchronous>, transform_indices = @transform_4, window_bounds = array<i64: 1, 512>}, {transform_indices = @transform_5, window_bounds = array<i64: 16, 512>}]} {
    %c0 = arith.constant 0 : index
    %c0_0 = arith.constant 0 : index
    %0 = vector.load %arg1[%c0, %c0_0] : memref<16x512xf32, #tpu.memory_space<vmem>>, vector<16x512xf32>
    %1 = arith.truncf %0 : vector<16x512xf32> to vector<16x512xbf16>
    %c0_1 = arith.constant 0 : index
    %c0_2 = arith.constant 0 : index
    %2 = vector.load %arg2[%c0_1, %c0_2] : memref<512x512xbf16, #tpu.memory_space<vmem>>, vector<512x512xbf16>
    %cst = arith.constant dense<0.000000e+00> : vector<16x512xf32>
    %3 = tpu.matmul %1, %2, %cst {dimension_numbers = #tpu.dot_dimension_numbers<[1], [0], [0], [1], [0, 0, 1, 1], [], []>} : vector<16x512xbf16>, vector<512x512xbf16>, vector<16x512xf32> -> vector<16x512xf32>
    %c0_3 = arith.constant 0 : index
    %c0_4 = arith.constant 0 : index
    %4 = vector.load %arg3[%c0_3, %c0_4] : memref<1x512xf32, #tpu.memory_space<vmem>>, vector<1x512xf32>
    %5 = vector.broadcast %4 : vector<1x512xf32> to vector<16x512xf32>
    %6 = arith.addf %3, %5 : vector<16x512xf32>
    %cst_5 = arith.constant 0.000000e+00 : f32
    %7 = vector.broadcast %cst_5 : f32 to vector<16x512xf32>
    %8 = arith.maximumf %6, %7 : vector<16x512xf32>
    %9 = arith.truncf %8 : vector<16x512xf32> to vector<16x512xbf16>
    %c0_6 = arith.constant 0 : index
    %c0_7 = arith.constant 0 : index
    %10 = vector.load %arg4[%c0_6, %c0_7] : memref<512x512xbf16, #tpu.memory_space<vmem>>, vector<512x512xbf16>
    %cst_8 = arith.constant dense<0.000000e+00> : vector<16x512xf32>
    %11 = tpu.matmul %9, %10, %cst_8 {dimension_numbers = #tpu.dot_dimension_numbers<[1], [0], [0], [1], [0, 0, 1, 1], [], []>} : vector<16x512xbf16>, vector<512x512xbf16>, vector<16x512xf32> -> vector<16x512xf32>
    %c0_9 = arith.constant 0 : index
    %c0_10 = arith.constant 0 : index
    %12 = vector.load %arg5[%c0_9, %c0_10] : memref<1x512xf32, #tpu.memory_space<vmem>>, vector<1x512xf32>
    %13 = vector.broadcast %12 : vector<1x512xf32> to vector<16x512xf32>
    %14 = arith.addf %11, %13 : vector<16x512xf32>
    %15 = math.tanh %14 : vector<16x512xf32>
    %c0_11 = arith.constant 0 : index
    %c0_12 = arith.constant 0 : index
    %16 = vector.load %arg6[%c0_11, %c0_12] : memref<16x512xf32, #tpu.memory_space<vmem>>, vector<16x512xf32>
    tpu.vector_store %arg6[%c0_11, %c0_12], %15 {strides = array<i32>} : memref<16x512xf32, #tpu.memory_space<vmem>>, vector<16x512xf32>,
    return
  }
  func.func @transform_0(%arg0: i32) -> (i32, i32) {
    %c0_i32 = arith.constant 0 : i32
    %c0_i32_0 = arith.constant 0 : i32
    return %arg0, %c0_i32 : i32, i32
  }
  func.func @transform_1(%arg0: i32) -> (i32, i32) {
    %c0_i32 = arith.constant 0 : i32
    %c0_i32_0 = arith.constant 0 : i32
    %c0_i32_1 = arith.constant 0 : i32
    return %c0_i32, %c0_i32_0 : i32, i32
  }
  func.func @transform_2(%arg0: i32) -> (i32, i32) {
    %c0_i32 = arith.constant 0 : i32
    %c0_i32_0 = arith.constant 0 : i32
    %c0_i32_1 = arith.constant 0 : i32
    return %c0_i32, %c0_i32_0 : i32, i32
  }
  func.func @transform_3(%arg0: i32) -> (i32, i32) {
    %c0_i32 = arith.constant 0 : i32
    %c0_i32_0 = arith.constant 0 : i32
    %c0_i32_1 = arith.constant 0 : i32
    return %c0_i32, %c0_i32_0 : i32, i32
  }
  func.func @transform_4(%arg0: i32) -> (i32, i32) {
    %c0_i32 = arith.constant 0 : i32
    %c0_i32_0 = arith.constant 0 : i32
    %c0_i32_1 = arith.constant 0 : i32
    return %c0_i32, %c0_i32_0 : i32, i32
  }
  func.func @transform_5(%arg0: i32) -> (i32, i32) {
    %c0_i32 = arith.constant 0 : i32
    %c0_i32_0 = arith.constant 0 : i32
    return %arg0, %c0_i32 : i32, i32
  }
}

</mosaic_0001>

<llo_original>
// kernel: tpu_custom_call.1
$region0: #{tpu_custom_call.1}
  #allocation0 [shape = 'u32[]', space=smem, size = 0x4, offset = 0x4, fixed_abs, tag = 'smem constant byte address 0x4 - core index']
  #allocation1 [shape = 'u32[72,128]{1,0:T(1,128)}', space=vmem, size = 0x9000, scoped, tag = 'internal scratch']
  %s0 = inlined_call_operand.hbm [shape: f32[16,512], index: 0, kind: input, shape index: {}]
  %s1 = inlined_call_operand.hbm [shape: bf16[512,512], index: 1, kind: input, shape index: {}]
  %s2 = inlined_call_operand.hbm [shape: f32[1,512], index: 2, kind: input, shape index: {}]
  %s3 = inlined_call_operand.hbm [shape: bf16[512,512], index: 3, kind: input, shape index: {}]
  %s4 = inlined_call_operand.hbm [shape: f32[1,512], index: 4, kind: input, shape index: {}]
  %s5 = inlined_call_operand.hbm [shape: f32[16,512], index: 5, kind: output, shape index: {}]
  %s6 = sld [smem:[#allocation0]]
  $region50: #{tpu_custom_call.1} parent=0
    _
  %s8 = ssub.s32 1, %s6
  %s9 = scalar_select 0, %s8, %s6
  $region1: #{tpu_custom_call.1} parent=0
    #allocation2 [shape = 'u8[32768]{0}', space=vmem, size = 0x8000, scoped, tag = 'input window, operand 0, single buffered']
    #allocation3 [shape = 's32[1]{0}', space=sflag, size = 0x4, scoped, tag = 'scoped memory for tpu_custom_call.1']
    #allocation4 [shape = 's32[1]{0}', space=sflag, size = 0x4, scoped, tag = 'scoped memory for tpu_custom_call.1']
    #allocation5 [shape = 'u8[524288]{0}', space=vmem, size = 0x80000, scoped, tag = 'input window, operand 1, single buffered']
    #allocation6 [shape = 's32[1]{0}', space=sflag, size = 0x4, scoped, tag = 'scoped memory for tpu_custom_call.1']
    #allocation7 [shape = 'u8[2048]{0}', space=vmem, size = 0x800, scoped, tag = 'input window, operand 2, single buffered']
    #allocation8 [shape = 'u8[524288]{0}', space=vmem, size = 0x80000, scoped, tag = 'input window, operand 3, single buffered']
    #allocation9 [shape = 's32[1]{0}', space=sflag, size = 0x4, scoped, tag = 'scoped memory for tpu_custom_call.1']
    #allocation10 [shape = 'u8[2048]{0}', space=vmem, size = 0x800, scoped, tag = 'input window, operand 4, single buffered']
    #allocation11 [shape = 'u8[32768]{0}', space=vmem, size = 0x8000, scoped, tag = 'output window, operand 0, single buffered']
    %10 = vsyncpa [#allocation3], 0
    %11 = vsyncpa [#allocation6], 0
    %12 = vsyncpa [#allocation9], 0
    %13 = vsyncpa [#allocation4], 0
    // Predicated region
    $region2: #{tpu_custom_call.1} parent=1 // pred_check
      _
    $region3: #{tpu_custom_call.1} parent=1 // pred_check_branch
      %15 = sbr.rel (0) target = $region5
    $region4: #{tpu_custom_call.1} parent=1 // pred_region
      %17 = vsyncadd [#allocation3], 0
      %s18 = sshll.u32 %s0, 4
      %s19 = int_to_ptr.hbm [resolvable:$true] %s18
      %s20 = sshll.u32 [#allocation2], 4
      %s21 = int_to_ptr.vmem [resolvable:$true] %s20
      %26 = dma.hbm_to_vmem [thread:$0]  %s19, 1024, %s21, [#allocation3], 512, 512, 32
    $region5: #{tpu_custom_call.1} parent=1 // pred_fallthru
      _
    // Predicated region
    $region6: #{tpu_custom_call.1} parent=1 // pred_check
      _
    $region7: #{tpu_custom_call.1} parent=1 // pred_check_branch
      %28 = sbr.rel (0) target = $region9
    $region8: #{tpu_custom_call.1} parent=1 // pred_region
      %30 = vsyncadd [#allocation6], 0
      %s31 = sshll.u32 %s1, 4
      %s32 = int_to_ptr.hbm [resolvable:$true] %s31
      %s33 = sshll.u32 [#allocation5], 4
      %s34 = int_to_ptr.vmem [resolvable:$true] %s33
      %39 = dma.hbm_to_vmem [thread:$0]  %s32, 16384, %s34, [#allocation6], 256, 256, 16
    $region9: #{tpu_custom_call.1} parent=1 // pred_fallthru
      _
    // Predicated region
    $region10: #{tpu_custom_call.1} parent=1 // pred_check
      _
    $region11: #{tpu_custom_call.1} parent=1 // pred_check_branch
      %41 = sbr.rel (0) target = $region13
    $region12: #{tpu_custom_call.1} parent=1 // pred_region
      %43 = vsyncadd [#allocation6], 0
      %s45 = sshll.u32 %s2, 4
      %s46 = int_to_ptr.hbm [resolvable:$true] %s45
      %s47 = sshll.u32 [#allocation7], 4
      %s48 = int_to_ptr.vmem [resolvable:$true] %s47
      %50 = dma.hbm_to_vmem [thread:$0]  %s46, 64, %s48, [#allocation6]
    $region13: #{tpu_custom_call.1} parent=1 // pred_fallthru
      _
    // Predicated region
    $region14: #{tpu_custom_call.1} parent=1 // pred_check
      _
    $region15: #{tpu_custom_call.1} parent=1 // pred_check_branch
      %52 = sbr.rel (0) target = $region17
    $region16: #{tpu_custom_call.1} parent=1 // pred_region
      %54 = vsyncadd [#allocation9], 0
      %s55 = sshll.u32 %s3, 4
      %s56 = int_to_ptr.hbm [resolvable:$true] %s55
      %s57 = sshll.u32 [#allocation8], 4
      %s58 = int_to_ptr.vmem [resolvable:$true] %s57
      %63 = dma.hbm_to_vmem [thread:$0]  %s56, 16384, %s58, [#allocation9], 256, 256, 16
    $region17: #{tpu_custom_call.1} parent=1 // pred_fallthru
      _
    // Predicated region
    $region18: #{tpu_custom_call.1} parent=1 // pred_check
      _
    $region19: #{tpu_custom_call.1} parent=1 // pred_check_branch
      %65 = sbr.rel (0) target = $region21
    $region20: #{tpu_custom_call.1} parent=1 // pred_region
      %67 = vsyncadd [#allocation9], 0
      %s69 = sshll.u32 %s4, 4
      %s70 = int_to_ptr.hbm [resolvable:$true] %s69
      %s71 = sshll.u32 [#allocation10], 4
      %s72 = int_to_ptr.vmem [resolvable:$true] %s71
      %74 = dma.hbm_to_vmem [thread:$0]  %s70, 64, %s72, [#allocation9]
    $region21: #{tpu_custom_call.1} parent=1 // pred_fallthru
      _
    // Predicated region
    $region22: #{tpu_custom_call.1} parent=1 // pred_check
      _
    $region23: #{tpu_custom_call.1} parent=1 // pred_check_branch
      %76 = sbr.rel (0) target = $region25
    $region24: #{tpu_custom_call.1} parent=1 // pred_region
      %78 = dma.done [#allocation3], 1024
    $region25: #{tpu_custom_call.1} parent=1 // pred_fallthru
      _
    // Predicated region
    $region26: #{tpu_custom_call.1} parent=1 // pred_check
      _
    $region27: #{tpu_custom_call.1} parent=1 // pred_check_branch
      %80 = sbr.rel (0) target = $region29
    $region28: #{tpu_custom_call.1} parent=1 // pred_region
      %82 = dma.done [#allocation6], 16384
    $region29: #{tpu_custom_call.1} parent=1 // pred_fallthru
      _
    // Predicated region
    $region30: #{tpu_custom_call.1} parent=1 // pred_check
      _
    $region31: #{tpu_custom_call.1} parent=1 // pred_check_branch
      %84 = sbr.rel (0) target = $region33
    $region32: #{tpu_custom_call.1} parent=1 // pred_region
      %86 = dma.done [#allocation6], 64
    $region33: #{tpu_custom_call.1} parent=1 // pred_fallthru
      _
    // Predicated region
    $region34: #{tpu_custom_call.1} parent=1 // pred_check
      _
    $region35: #{tpu_custom_call.1} parent=1 // pred_check_branch
      %88 = sbr.rel (0) target = $region37
    $region36: #{tpu_custom_call.1} parent=1 // pred_region
      %90 = dma.done [#allocation9], 16384
    $region37: #{tpu_custom_call.1} parent=1 // pred_fallthru
      _
    // Predicated region
    $region38: #{tpu_custom_call.1} parent=1 // pred_check
      _
    $region39: #{tpu_custom_call.1} parent=1 // pred_check_branch
      %92 = sbr.rel (0) target = $region41
    $region40: #{tpu_custom_call.1} parent=1 // pred_region
      %94 = dma.done [#allocation9], 64
    $region41: #{tpu_custom_call.1} parent=1 // pred_fallthru
      _
    %v95 = vld [vmem:[#allocation2] sm:$0xff]
    %v96 = vld [vmem:[#allocation2 + $0x8] sm:$0xff]
    %v97 = vld [vmem:[#allocation2 + $0x10] sm:$0xff]
    %v98 = vld [vmem:[#allocation2 + $0x18] sm:$0xff]
    %v99 = vld [vmem:[#allocation2 + $0x20] sm:$0xff]
    %v100 = vld [vmem:[#allocation2 + $0x28] sm:$0xff]
    %v101 = vld [vmem:[#allocation2 + $0x30] sm:$0xff]
    %v102 = vld [vmem:[#allocation2 + $0x38] sm:$0xff]
    %v103 = vpack.c.bf16 %v99, %v95
    %v104 = vpack.c.bf16 %v100, %v96
    %v105 = vpack.c.bf16 %v101, %v97
    %v106 = vpack.c.bf16 %v102, %v98
    %v107 = vld [vmem:[#allocation5] sm:$0xff]
    %v108 = vld [vmem:[#allocation5 + $0x8] sm:$0xff]
    %v109 = vld [vmem:[#allocation5 + $0x10] sm:$0xff]
    %v110 = vld [vmem:[#allocation5 + $0x18] sm:$0xff]
    %v111 = vld [vmem:[#allocation5 + $0x20] sm:$0xff]
    %v112 = vld [vmem:[#allocation5 + $0x28] sm:$0xff]
    %v113 = vld [vmem:[#allocation5 + $0x30] sm:$0xff]
    %v114 = vld [vmem:[#allocation5 + $0x38] sm:$0xff]
    %v115 = vld [vmem:[#allocation5 + $0x40] sm:$0xff]
    %v116 = vld [vmem:[#allocation5 + $0x48] sm:$0xff]
    %v117 = vld [vmem:[#allocation5 + $0x50] sm:$0xff]
    %v118 = vld [vmem:[#allocation5 + $0x58] sm:$0xff]
    %v119 = vld [vmem:[#allocation5 + $0x60] sm:$0xff]
    %v120 = vld [vmem:[#allocation5 + $0x68] sm:$0xff]
    %v121 = vld [vmem:[#allocation5 + $0x70] sm:$0xff]
    %v122 = vld [vmem:[#allocation5 + $0x78] sm:$0xff]
    %v123 = vld [vmem:[#allocation5 + $0x80] sm:$0xff]
    %v124 = vld [vmem:[#allocation5 + $0x88] sm:$0xff]
    %v125 = vld [vmem:[#allocation5 + $0x90] sm:$0xff]
    %v126 = vld [vmem:[#allocation5 + $0x98] sm:$0xff]
    %v127 = vld [vmem:[#allocation5 + $0xa0] sm:$0xff]
    %v128 = vld [vmem:[#allocation5 + $0xa8] sm:$0xff]
    %v129 = vld [vmem:[#allocation5 + $0xb0] sm:$0xff]
    %v130 = vld [vmem:[#allocation5 + $0xb8] sm:$0xff]
    %v131 = vld [vmem:[#allocation5 + $0xc0] sm:$0xff]
    %v132 = vld [vmem:[#allocation5 + $0xc8] sm:$0xff]
    %v133 = vld [vmem:[#allocation5 + $0xd0] sm:$0xff]
    %v134 = vld [vmem:[#allocation5 + $0xd8] sm:$0xff]
    %v135 = vld [vmem:[#allocation5 + $0xe0] sm:$0xff]
    %v136 = vld [vmem:[#allocation5 + $0xe8] sm:$0xff]
    %v137 = vld [vmem:[#allocation5 + $0xf0] sm:$0xff]
    %v138 = vld [vmem:[#allocation5 + $0xf8] sm:$0xff]
    %v139 = vld [vmem:[#allocation5 + $0x100] sm:$0xff]
    %v140 = vld [vmem:[#allocation5 + $0x108] sm:$0xff]
    %v141 = vld [vmem:[#allocation5 + $0x110] sm:$0xff]
    %v142 = vld [vmem:[#allocation5 + $0x118] sm:$0xff]
    %v143 = vld [vmem:[#allocation5 + $0x120] sm:$0xff]
    %v144 = vld [vmem:[#allocation5 + $0x128] sm:$0xff]
    %v145 = vld [vmem:[#allocation5 + $0x130] sm:$0xff]
    %v146 = vld [vmem:[#allocation5 + $0x138] sm:$0xff]
    %v147 = vld [vmem:[#allocation5 + $0x140] sm:$0xff]
    %v148 = vld [vmem:[#allocation5 + $0x148] sm:$0xff]
    %v149 = vld [vmem:[#allocation5 + $0x150] sm:$0xff]
    %v150 = vld [vmem:[#allocation5 + $0x158] sm:$0xff]
    %v151 = vld [vmem:[#allocation5 + $0x160] sm:$0xff]
    %v152 = vld [vmem:[#allocation5 + $0x168] sm:$0xff]
    %v153 = vld [vmem:[#allocation5 + $0x170] sm:$0xff]
    %v154 = vld [vmem:[#allocation5 + $0x178] sm:$0xff]
    %v155 = vld [vmem:[#allocation5 + $0x180] sm:$0xff]
    %v156 = vld [vmem:[#allocation5 + $0x188] sm:$0xff]
    %v157 = vld [vmem:[#allocation5 + $0x190] sm:$0xff]
    %v158 = vld [vmem:[#allocation5 + $0x198] sm:$0xff]
    %v159 = vld [vmem:[#allocation5 + $0x1a0] sm:$0xff]
    %v160 = vld [vmem:[#allocation5 + $0x1a8] sm:$0xff]
    %v161 = vld [vmem:[#allocation5 + $0x1b0] sm:$0xff]
    %v162 = vld [vmem:[#allocation5 + $0x1b8] sm:$0xff]
    %v163 = vld [vmem:[#allocation5 + $0x1c0] sm:$0xff]
    %v164 = vld [vmem:[#allocation5 + $0x1c8] sm:$0xff]
    %v165 = vld [vmem:[#allocation5 + $0x1d0] sm:$0xff]
    %v166 = vld [vmem:[#allocation5 + $0x1d8] sm:$0xff]
    %v167 = vld [vmem:[#allocation5 + $0x1e0] sm:$0xff]
    %v168 = vld [vmem:[#allocation5 + $0x1e8] sm:$0xff]
    %v169 = vld [vmem:[#allocation5 + $0x1f0] sm:$0xff]
    %v170 = vld [vmem:[#allocation5 + $0x1f8] sm:$0xff]
    %v171 = vld [vmem:[#allocation5 + $0x200] sm:$0xff]
    %v172 = vld [vmem:[#allocation5 + $0x208] sm:$0xff]
    %v173 = vld [vmem:[#allocation5 + $0x210] sm:$0xff]
    %v174 = vld [vmem:[#allocation5 + $0x218] sm:$0xff]
    %v175 = vld [vmem:[#allocation5 + $0x220] sm:$0xff]
    %v176 = vld [vmem:[#allocation5 + $0x228] sm:$0xff]
    %v177 = vld [vmem:[#allocation5 + $0x230] sm:$0xff]
    %v178 = vld [vmem:[#allocation5 + $0x238] sm:$0xff]
    %v179 = vld [vmem:[#allocation5 + $0x240] sm:$0xff]
    %v180 = vld [vmem:[#allocation5 + $0x248] sm:$0xff]
    %v181 = vld [vmem:[#allocation5 + $0x250] sm:$0xff]
    %v182 = vld [vmem:[#allocation5 + $0x258] sm:$0xff]
    %v183 = vld [vmem:[#allocation5 + $0x260] sm:$0xff]
    %v184 = vld [vmem:[#allocation5 + $0x268] sm:$0xff]
    %v185 = vld [vmem:[#allocation5 + $0x270] sm:$0xff]
    %v186 = vld [vmem:[#allocation5 + $0x278] sm:$0xff]
    %v187 = vld [vmem:[#allocation5 + $0x280] sm:$0xff]
    %v188 = vld [vmem:[#allocation5 + $0x288] sm:$0xff]
    %v189 = vld [vmem:[#allocation5 + $0x290] sm:$0xff]
    %v190 = vld [vmem:[#allocation5 + $0x298] sm:$0xff]
    %v191 = vld [vmem:[#allocation5 + $0x2a0] sm:$0xff]
    %v192 = vld [vmem:[#allocation5 + $0x2a8] sm:$0xff]
    %v193 = vld [vmem:[#allocation5 + $0x2b0] sm:$0xff]
    %v194 = vld [vmem:[#allocation5 + $0x2b8] sm:$0xff]
    %v195 = vld [vmem:[#allocation5 + $0x2c0] sm:$0xff]
    %v196 = vld [vmem:[#allocation5 + $0x2c8] sm:$0xff]
    %v197 = vld [vmem:[#allocation5 + $0x2d0] sm:$0xff]
    %v198 = vld [vmem:[#allocation5 + $0x2d8] sm:$0xff]
    %v199 = vld [vmem:[#allocation5 + $0x2e0] sm:$0xff]
    %v200 = vld [vmem:[#allocation5 + $0x2e8] sm:$0xff]
    %v201 = vld [vmem:[#allocation5 + $0x2f0] sm:$0xff]
    %v202 = vld [vmem:[#allocation5 + $0x2f8] sm:$0xff]
    %v203 = vld [vmem:[#allocation5 + $0x300] sm:$0xff]
    %v204 = vld [vmem:[#allocation5 + $0x308] sm:$0xff]
    %v205 = vld [vmem:[#allocation5 + $0x310] sm:$0xff]
    %v206 = vld [vmem:[#allocation5 + $0x318] sm:$0xff]
    %v207 = vld [vmem:[#allocation5 + $0x320] sm:$0xff]
    %v208 = vld [vmem:[#allocation5 + $0x328] sm:$0xff]
    %v209 = vld [vmem:[#allocation5 + $0x330] sm:$0xff]
    %v210 = vld [vmem:[#allocation5 + $0x338] sm:$0xff]
    %v211 = vld [vmem:[#allocation5 + $0x340] sm:$0xff]
    %v212 = vld [vmem:[#allocation5 + $0x348] sm:$0xff]
    %v213 = vld [vmem:[#allocation5 + $0x350] sm:$0xff]
    %v214 = vld [vmem:[#allocation5 + $0x358] sm:$0xff]
    %v215 = vld [vmem:[#allocation5 + $0x360] sm:$0xff]
    %v216 = vld [vmem:[#allocation5 + $0x368] sm:$0xff]
    %v217 = vld [vmem:[#allocation5 + $0x370] sm:$0xff]
    %v218 = vld [vmem:[#allocation5 + $0x378] sm:$0xff]
    %v219 = vld [vmem:[#allocation5 + $0x380] sm:$0xff]
    %v220 = vld [vmem:[#allocation5 + $0x388] sm:$0xff]
    %v221 = vld [vmem:[#allocation5 + $0x390] sm:$0xff]
    %v222 = vld [vmem:[#allocation5 + $0x398] sm:$0xff]
    %v223 = vld [vmem:[#allocation5 + $0x3a0] sm:$0xff]
    %v224 = vld [vmem:[#allocation5 + $0x3a8] sm:$0xff]
    %v225 = vld [vmem:[#allocation5 + $0x3b0] sm:$0xff]
    %v226 = vld [vmem:[#allocation5 + $0x3b8] sm:$0xff]
    %v227 = vld [vmem:[#allocation5 + $0x3c0] sm:$0xff]
    %v228 = vld [vmem:[#allocation5 + $0x3c8] sm:$0xff]
    %v229 = vld [vmem:[#allocation5 + $0x3d0] sm:$0xff]
    %v230 = vld [vmem:[#allocation5 + $0x3d8] sm:$0xff]
    %v231 = vld [vmem:[#allocation5 + $0x3e0] sm:$0xff]
    %v232 = vld [vmem:[#allocation5 + $0x3e8] sm:$0xff]
    %v233 = vld [vmem:[#allocation5 + $0x3f0] sm:$0xff]
    %v234 = vld [vmem:[#allocation5 + $0x3f8] sm:$0xff]
    %v235 = vld [vmem:[#allocation7] sm:$0xf]
    %v237 = vperm.slane %v235, 0
    %v238 = vperm.slane %v235, 1
    %v239 = vperm.slane %v235, 2
    %v240 = vperm.slane %v235, 3
    %v373 = vunpack.c.l.b16 %v107
    %v374 = vunpack.c.h.b16 %v107
    %v375 = vunpack.c.l.b16 %v108
    %v376 = vunpack.c.h.b16 %v108
    %v377 = vunpack.c.l.b16 %v109
    %v378 = vunpack.c.h.b16 %v109
    %v379 = vunpack.c.l.b16 %v110
    %v380 = vunpack.c.h.b16 %v110
    %v381 = vunpack.c.l.b16 %v111
    %v382 = vunpack.c.h.b16 %v111
    %v383 = vunpack.c.l.b16 %v112
    %v384 = vunpack.c.h.b16 %v112
    %v385 = vunpack.c.l.b16 %v113
    %v386 = vunpack.c.h.b16 %v113
    %v387 = vunpack.c.l.b16 %v114
    %v388 = vunpack.c.h.b16 %v114
    %v389 = vunpack.c.l.b16 %v115
    %v390 = vunpack.c.h.b16 %v115
    %v391 = vunpack.c.l.b16 %v116
    %v392 = vunpack.c.h.b16 %v116
    %v393 = vunpack.c.l.b16 %v117
    %v394 = vunpack.c.h.b16 %v117
    %v395 = vunpack.c.l.b16 %v118
    %v396 = vunpack.c.h.b16 %v118
    %v397 = vunpack.c.l.b16 %v119
    %v398 = vunpack.c.h.b16 %v119
    %v399 = vunpack.c.l.b16 %v120
    %v400 = vunpack.c.h.b16 %v120
    %v401 = vunpack.c.l.b16 %v121
    %v402 = vunpack.c.h.b16 %v121
    %v403 = vunpack.c.l.b16 %v122
    %v404 = vunpack.c.h.b16 %v122
    %v405 = vunpack.c.l.b16 %v123
    %v406 = vunpack.c.h.b16 %v123
    %v407 = vunpack.c.l.b16 %v124
    %v408 = vunpack.c.h.b16 %v124
    %v409 = vunpack.c.l.b16 %v125
    %v410 = vunpack.c.h.b16 %v125
    %v411 = vunpack.c.l.b16 %v126
    %v412 = vunpack.c.h.b16 %v126
    %v413 = vunpack.c.l.b16 %v127
    %v414 = vunpack.c.h.b16 %v127
    %v415 = vunpack.c.l.b16 %v128
    %v416 = vunpack.c.h.b16 %v128
    %v417 = vunpack.c.l.b16 %v129
    %v418 = vunpack.c.h.b16 %v129
    %v419 = vunpack.c.l.b16 %v130
    %v420 = vunpack.c.h.b16 %v130
    %v421 = vunpack.c.l.b16 %v131
    %v422 = vunpack.c.h.b16 %v131
    %v423 = vunpack.c.l.b16 %v132
    %v424 = vunpack.c.h.b16 %v132
    %v425 = vunpack.c.l.b16 %v133
    %v426 = vunpack.c.h.b16 %v133
    %v427 = vunpack.c.l.b16 %v134
    %v428 = vunpack.c.h.b16 %v134
    %v429 = vunpack.c.l.b16 %v135
    %v430 = vunpack.c.h.b16 %v135
    %v431 = vunpack.c.l.b16 %v136
    %v432 = vunpack.c.h.b16 %v136
    %v433 = vunpack.c.l.b16 %v137
    %v434 = vunpack.c.h.b16 %v137
    %v435 = vunpack.c.l.b16 %v138
    %v436 = vunpack.c.h.b16 %v138
    %v437 = vunpack.c.l.b16 %v139
    %v438 = vunpack.c.h.b16 %v139
    %v439 = vunpack.c.l.b16 %v140
    %v440 = vunpack.c.h.b16 %v140
    %v441 = vunpack.c.l.b16 %v141
    %v442 = vunpack.c.h.b16 %v141
    %v443 = vunpack.c.l.b16 %v142
    %v444 = vunpack.c.h.b16 %v142
    %v445 = vunpack.c.l.b16 %v143
    %v446 = vunpack.c.h.b16 %v143
    %v447 = vunpack.c.l.b16 %v144
    %v448 = vunpack.c.h.b16 %v144
    %v449 = vunpack.c.l.b16 %v145
    %v450 = vunpack.c.h.b16 %v145
    %v451 = vunpack.c.l.b16 %v146
    %v452 = vunpack.c.h.b16 %v146
    %v453 = vunpack.c.l.b16 %v147
    %v454 = vunpack.c.h.b16 %v147
    %v455 = vunpack.c.l.b16 %v148
    %v456 = vunpack.c.h.b16 %v148
    %v457 = vunpack.c.l.b16 %v149
    %v458 = vunpack.c.h.b16 %v149
    %v459 = vunpack.c.l.b16 %v150
    %v460 = vunpack.c.h.b16 %v150
    %v461 = vunpack.c.l.b16 %v151
    %v462 = vunpack.c.h.b16 %v151
    %v463 = vunpack.c.l.b16 %v152
    %v464 = vunpack.c.h.b16 %v152
    %v465 = vunpack.c.l.b16 %v153
    %v466 = vunpack.c.h.b16 %v153
    %v467 = vunpack.c.l.b16 %v154
    %v468 = vunpack.c.h.b16 %v154
    %v469 = vunpack.c.l.b16 %v155
    %v470 = vunpack.c.h.b16 %v155
    %v471 = vunpack.c.l.b16 %v156
    %v472 = vunpack.c.h.b16 %v156
    %v473 = vunpack.c.l.b16 %v157
    %v474 = vunpack.c.h.b16 %v157
    %v475 = vunpack.c.l.b16 %v158
    %v476 = vunpack.c.h.b16 %v158
    %v477 = vunpack.c.l.b16 %v159
    %v478 = vunpack.c.h.b16 %v159
    %v479 = vunpack.c.l.b16 %v160
    %v480 = vunpack.c.h.b16 %v160
    %v481 = vunpack.c.l.b16 %v161
    %v482 = vunpack.c.h.b16 %v161
    %v483 = vunpack.c.l.b16 %v162
    %v484 = vunpack.c.h.b16 %v162
    %v485 = vunpack.c.l.b16 %v163
    %v486 = vunpack.c.h.b16 %v163
    %v487 = vunpack.c.l.b16 %v164
    %v488 = vunpack.c.h.b16 %v164
    %v489 = vunpack.c.l.b16 %v165
    %v490 = vunpack.c.h.b16 %v165
    %v491 = vunpack.c.l.b16 %v166
    %v492 = vunpack.c.h.b16 %v166
    %v493 = vunpack.c.l.b16 %v167
    %v494 = vunpack.c.h.b16 %v167
    %v495 = vunpack.c.l.b16 %v168
    %v496 = vunpack.c.h.b16 %v168
    %v497 = vunpack.c.l.b16 %v169
    %v498 = vunpack.c.h.b16 %v169
    %v499 = vunpack.c.l.b16 %v170
    %v500 = vunpack.c.h.b16 %v170
    %v501 = vunpack.c.l.b16 %v171
    %v502 = vunpack.c.h.b16 %v171
    %v503 = vunpack.c.l.b16 %v172
    %v504 = vunpack.c.h.b16 %v172
    %v505 = vunpack.c.l.b16 %v173
    %v506 = vunpack.c.h.b16 %v173
    %v507 = vunpack.c.l.b16 %v174
    %v508 = vunpack.c.h.b16 %v174
    %v509 = vunpack.c.l.b16 %v175
    %v510 = vunpack.c.h.b16 %v175
    %v511 = vunpack.c.l.b16 %v176
    %v512 = vunpack.c.h.b16 %v176
    %v513 = vunpack.c.l.b16 %v177
    %v514 = vunpack.c.h.b16 %v177
    %v515 = vunpack.c.l.b16 %v178
    %v516 = vunpack.c.h.b16 %v178
    %v517 = vunpack.c.l.b16 %v179
    %v518 = vunpack.c.h.b16 %v179
    %v519 = vunpack.c.l.b16 %v180
    %v520 = vunpack.c.h.b16 %v180
    %v521 = vunpack.c.l.b16 %v181
    %v522 = vunpack.c.h.b16 %v181
    %v523 = vunpack.c.l.b16 %v182
    %v524 = vunpack.c.h.b16 %v182
    %v525 = vunpack.c.l.b16 %v183
    %v526 = vunpack.c.h.b16 %v183
    %v527 = vunpack.c.l.b16 %v184
    %v528 = vunpack.c.h.b16 %v184
    %v529 = vunpack.c.l.b16 %v185
    %v530 = vunpack.c.h.b16 %v185
    %v531 = vunpack.c.l.b16 %v186
    %v532 = vunpack.c.h.b16 %v186
    %v533 = vunpack.c.l.b16 %v187
    %v534 = vunpack.c.h.b16 %v187
    %v535 = vunpack.c.l.b16 %v188
    %v536 = vunpack.c.h.b16 %v188
    %v537 = vunpack.c.l.b16 %v189
    %v538 = vunpack.c.h.b16 %v189
    %v539 = vunpack.c.l.b16 %v190
    %v540 = vunpack.c.h.b16 %v190
    %v541 = vunpack.c.l.b16 %v191
    %v542 = vunpack.c.h.b16 %v191
    %v543 = vunpack.c.l.b16 %v192
    %v544 = vunpack.c.h.b16 %v192
    %v545 = vunpack.c.l.b16 %v193
    %v546 = vunpack.c.h.b16 %v193
    %v547 = vunpack.c.l.b16 %v194
    %v548 = vunpack.c.h.b16 %v194
    %v549 = vunpack.c.l.b16 %v195
    %v550 = vunpack.c.h.b16 %v195
    %v551 = vunpack.c.l.b16 %v196
    %v552 = vunpack.c.h.b16 %v196
    %v553 = vunpack.c.l.b16 %v197
    %v554 = vunpack.c.h.b16 %v197
    %v555 = vunpack.c.l.b16 %v198
    %v556 = vunpack.c.h.b16 %v198
    %v557 = vunpack.c.l.b16 %v199
    %v558 = vunpack.c.h.b16 %v199
    %v559 = vunpack.c.l.b16 %v200
    %v560 = vunpack.c.h.b16 %v200
    %v561 = vunpack.c.l.b16 %v201
    %v562 = vunpack.c.h.b16 %v201
    %v563 = vunpack.c.l.b16 %v202
    %v564 = vunpack.c.h.b16 %v202
    %v565 = vunpack.c.l.b16 %v203
    %v566 = vunpack.c.h.b16 %v203
    %v567 = vunpack.c.l.b16 %v204
    %v568 = vunpack.c.h.b16 %v204
    %v569 = vunpack.c.l.b16 %v205
    %v570 = vunpack.c.h.b16 %v205
    %v571 = vunpack.c.l.b16 %v206
    %v572 = vunpack.c.h.b16 %v206
    %v573 = vunpack.c.l.b16 %v207
    %v574 = vunpack.c.h.b16 %v207
    %v575 = vunpack.c.l.b16 %v208
    %v576 = vunpack.c.h.b16 %v208
    %v577 = vunpack.c.l.b16 %v209
    %v578 = vunpack.c.h.b16 %v209
    %v579 = vunpack.c.l.b16 %v210
    %v580 = vunpack.c.h.b16 %v210
    %v581 = vunpack.c.l.b16 %v211
    %v582 = vunpack.c.h.b16 %v211
    %v583 = vunpack.c.l.b16 %v212
    %v584 = vunpack.c.h.b16 %v212
    %v585 = vunpack.c.l.b16 %v213
    %v586 = vunpack.c.h.b16 %v213
    %v587 = vunpack.c.l.b16 %v214
    %v588 = vunpack.c.h.b16 %v214
    %v589 = vunpack.c.l.b16 %v215
    %v590 = vunpack.c.h.b16 %v215
    %v591 = vunpack.c.l.b16 %v216
    %v592 = vunpack.c.h.b16 %v216
    %v593 = vunpack.c.l.b16 %v217
    %v594 = vunpack.c.h.b16 %v217
    %v595 = vunpack.c.l.b16 %v218
    %v596 = vunpack.c.h.b16 %v218
    %v597 = vunpack.c.l.b16 %v219
    %v598 = vunpack.c.h.b16 %v219
    %v599 = vunpack.c.l.b16 %v220
    %v600 = vunpack.c.h.b16 %v220
    %v601 = vunpack.c.l.b16 %v221
    %v602 = vunpack.c.h.b16 %v221
    %v603 = vunpack.c.l.b16 %v222
    %v604 = vunpack.c.h.b16 %v222
    %v605 = vunpack.c.l.b16 %v223
    %v606 = vunpack.c.h.b16 %v223
    %v607 = vunpack.c.l.b16 %v224
    %v608 = vunpack.c.h.b16 %v224
    %v609 = vunpack.c.l.b16 %v225
    %v610 = vunpack.c.h.b16 %v225
    %v611 = vunpack.c.l.b16 %v226
    %v612 = vunpack.c.h.b16 %v226
    %v613 = vunpack.c.l.b16 %v227
    %v614 = vunpack.c.h.b16 %v227
    %v615 = vunpack.c.l.b16 %v228
    %v616 = vunpack.c.h.b16 %v228
    %v617 = vunpack.c.l.b16 %v229
    %v618 = vunpack.c.h.b16 %v229
    %v619 = vunpack.c.l.b16 %v230
    %v620 = vunpack.c.h.b16 %v230
    %v621 = vunpack.c.l.b16 %v231
    %v622 = vunpack.c.h.b16 %v231
    %v623 = vunpack.c.l.b16 %v232
    %v624 = vunpack.c.h.b16 %v232
    %v625 = vunpack.c.l.b16 %v233
    %v626 = vunpack.c.h.b16 %v233
    %v627 = vunpack.c.l.b16 %v234
    %v628 = vunpack.c.h.b16 %v234
    %v629 = vpack.c.b16 %v377, %v373
    %v630 = vpack.c.b16 %v378, %v374
    %v631 = vpack.c.b16 %v379, %v375
    %v632 = vpack.c.b16 %v380, %v376
    %v633 = vpack.c.b16 %v385, %v381
    %v634 = vpack.c.b16 %v386, %v382
    %v635 = vpack.c.b16 %v387, %v383
    %v636 = vpack.c.b16 %v388, %v384
    %v637 = vpack.c.b16 %v393, %v389
    %v638 = vpack.c.b16 %v394, %v390
    %v639 = vpack.c.b16 %v395, %v391
    %v640 = vpack.c.b16 %v396, %v392
    %v641 = vpack.c.b16 %v401, %v397
    %v642 = vpack.c.b16 %v402, %v398
    %v643 = vpack.c.b16 %v403, %v399
    %v644 = vpack.c.b16 %v404, %v400
    %v645 = vpack.c.b16 %v409, %v405
    %v646 = vpack.c.b16 %v410, %v406
    %v647 = vpack.c.b16 %v411, %v407
    %v648 = vpack.c.b16 %v412, %v408
    %v649 = vpack.c.b16 %v417, %v413
    %v650 = vpack.c.b16 %v418, %v414
    %v651 = vpack.c.b16 %v419, %v415
    %v652 = vpack.c.b16 %v420, %v416
    %v653 = vpack.c.b16 %v425, %v421
    %v654 = vpack.c.b16 %v426, %v422
    %v655 = vpack.c.b16 %v427, %v423
    %v656 = vpack.c.b16 %v428, %v424
    %v657 = vpack.c.b16 %v433, %v429
    %v658 = vpack.c.b16 %v434, %v430
    %v659 = vpack.c.b16 %v435, %v431
    %v660 = vpack.c.b16 %v436, %v432
    %v661 = vpack.c.b16 %v441, %v437
    %v662 = vpack.c.b16 %v442, %v438
    %v663 = vpack.c.b16 %v443, %v439
    %v664 = vpack.c.b16 %v444, %v440
    %v665 = vpack.c.b16 %v449, %v445
    %v666 = vpack.c.b16 %v450, %v446
    %v667 = vpack.c.b16 %v451, %v447
    %v668 = vpack.c.b16 %v452, %v448
    %v669 = vpack.c.b16 %v457, %v453
    %v670 = vpack.c.b16 %v458, %v454
    %v671 = vpack.c.b16 %v459, %v455
    %v672 = vpack.c.b16 %v460, %v456
    %v673 = vpack.c.b16 %v465, %v461
    %v674 = vpack.c.b16 %v466, %v462
    %v675 = vpack.c.b16 %v467, %v463
    %v676 = vpack.c.b16 %v468, %v464
    %v677 = vpack.c.b16 %v473, %v469
    %v678 = vpack.c.b16 %v474, %v470
    %v679 = vpack.c.b16 %v475, %v471
    %v680 = vpack.c.b16 %v476, %v472
    %v681 = vpack.c.b16 %v481, %v477
    %v682 = vpack.c.b16 %v482, %v478
    %v683 = vpack.c.b16 %v483, %v479
    %v684 = vpack.c.b16 %v484, %v480
    %v685 = vpack.c.b16 %v489, %v485
    %v686 = vpack.c.b16 %v490, %v486
    %v687 = vpack.c.b16 %v491, %v487
    %v688 = vpack.c.b16 %v492, %v488
    %v689 = vpack.c.b16 %v497, %v493
    %v690 = vpack.c.b16 %v498, %v494
    %v691 = vpack.c.b16 %v499, %v495
    %v692 = vpack.c.b16 %v500, %v496
    %v693 = vpack.c.b16 %v505, %v501
    %v694 = vpack.c.b16 %v506, %v502
    %v695 = vpack.c.b16 %v507, %v503
    %v696 = vpack.c.b16 %v508, %v504
    %v697 = vpack.c.b16 %v513, %v509
    %v698 = vpack.c.b16 %v514, %v510
    %v699 = vpack.c.b16 %v515, %v511
    %v700 = vpack.c.b16 %v516, %v512
    %v701 = vpack.c.b16 %v521, %v517
    %v702 = vpack.c.b16 %v522, %v518
    %v703 = vpack.c.b16 %v523, %v519
    %v704 = vpack.c.b16 %v524, %v520
    %v705 = vpack.c.b16 %v529, %v525
    %v706 = vpack.c.b16 %v530, %v526
    %v707 = vpack.c.b16 %v531, %v527
    %v708 = vpack.c.b16 %v532, %v528
    %v709 = vpack.c.b16 %v537, %v533
    %v710 = vpack.c.b16 %v538, %v534
    %v711 = vpack.c.b16 %v539, %v535
    %v712 = vpack.c.b16 %v540, %v536
    %v713 = vpack.c.b16 %v545, %v541
    %v714 = vpack.c.b16 %v546, %v542
    %v715 = vpack.c.b16 %v547, %v543
    %v716 = vpack.c.b16 %v548, %v544
    %v717 = vpack.c.b16 %v553, %v549
    %v718 = vpack.c.b16 %v554, %v550
    %v719 = vpack.c.b16 %v555, %v551
    %v720 = vpack.c.b16 %v556, %v552
    %v721 = vpack.c.b16 %v561, %v557
    %v722 = vpack.c.b16 %v562, %v558
    %v723 = vpack.c.b16 %v563, %v559
    %v724 = vpack.c.b16 %v564, %v560
    %v725 = vpack.c.b16 %v569, %v565
    %v726 = vpack.c.b16 %v570, %v566
    %v727 = vpack.c.b16 %v571, %v567
    %v728 = vpack.c.b16 %v572, %v568
    %v729 = vpack.c.b16 %v577, %v573
    %v730 = vpack.c.b16 %v578, %v574
    %v731 = vpack.c.b16 %v579, %v575
    %v732 = vpack.c.b16 %v580, %v576
    %v733 = vpack.c.b16 %v585, %v581
    %v734 = vpack.c.b16 %v586, %v582
    %v735 = vpack.c.b16 %v587, %v583
    %v736 = vpack.c.b16 %v588, %v584
    %v737 = vpack.c.b16 %v593, %v589
    %v738 = vpack.c.b16 %v594, %v590
    %v739 = vpack.c.b16 %v595, %v591
    %v740 = vpack.c.b16 %v596, %v592
    %v741 = vpack.c.b16 %v601, %v597
    %v742 = vpack.c.b16 %v602, %v598
    %v743 = vpack.c.b16 %v603, %v599
    %v744 = vpack.c.b16 %v604, %v600
    %v745 = vpack.c.b16 %v609, %v605
    %v746 = vpack.c.b16 %v610, %v606
    %v747 = vpack.c.b16 %v611, %v607
    %v748 = vpack.c.b16 %v612, %v608
    %v749 = vpack.c.b16 %v617, %v613
    %v750 = vpack.c.b16 %v618, %v614
    %v751 = vpack.c.b16 %v619, %v615
    %v752 = vpack.c.b16 %v620, %v616
    %v753 = vpack.c.b16 %v625, %v621
    %v754 = vpack.c.b16 %v626, %v622
    %v755 = vpack.c.b16 %v627, %v623
    %v756 = vpack.c.b16 %v628, %v624
    %885 = vmatpush.bf16.msra.mxu0 %v657
    %886 = vmatpush.bf16.msra.mxu0 %v653
    %887 = vmatpush.bf16.msra.mxu0 %v649
    %888 = vmatpush.bf16.msra.mxu0 %v645
    %889 = vmatpush.bf16.msra.mxu0 %v641
    %890 = vmatpush.bf16.msra.mxu0 %v637
    %891 = vmatpush.bf16.msra.mxu0 %v633
    %892 = vmatpush.bf16.msra.mxu0 %v629
    %893 = vmatmul.bf16.gmra.mxu0 %v103
    %v894 = vpop.f32.mrf.mxu0
    %v895 = vadd.f32 %v237, %v894
    %v896 = vpop.f32.mrf.mxu0
    %v897 = vadd.f32 %v237, %v896
    %898 = vdwg.mxu0
    %899 = vmatpush.bf16.msra.mxu0 %v689
    %900 = vmatpush.bf16.msra.mxu0 %v685
    %901 = vmatpush.bf16.msra.mxu0 %v681
    %902 = vmatpush.bf16.msra.mxu0 %v677
    %903 = vmatpush.bf16.msra.mxu0 %v673
    %904 = vmatpush.bf16.msra.mxu0 %v669
    %905 = vmatpush.bf16.msra.mxu0 %v665
    %906 = vmatpush.bf16.msra.mxu0 %v661
    %907 = vmatmul.bf16.gmra.mxu0 %v104
    %v908 = vpop.f32.mrf.mxu0
    %v909 = vadd.f32 %v895, %v908
    %v910 = vpop.f32.mrf.mxu0
    %v911 = vadd.f32 %v897, %v910
    %912 = vdwg.mxu0
    %913 = vmatpush.bf16.msra.mxu0 %v721
    %914 = vmatpush.bf16.msra.mxu0 %v717
    %915 = vmatpush.bf16.msra.mxu0 %v713
    %916 = vmatpush.bf16.msra.mxu0 %v709
    %917 = vmatpush.bf16.msra.mxu0 %v705
    %918 = vmatpush.bf16.msra.mxu0 %v701
    %919 = vmatpush.bf16.msra.mxu0 %v697
    %920 = vmatpush.bf16.msra.mxu0 %v693
    %921 = vmatmul.bf16.gmra.mxu0 %v105
    %v922 = vpop.f32.mrf.mxu0
    %v923 = vadd.f32 %v909, %v922
    %v924 = vpop.f32.mrf.mxu0
    %v925 = vadd.f32 %v911, %v924
    %926 = vdwg.mxu0
    %927 = vmatpush.bf16.msra.mxu0 %v753
    %928 = vmatpush.bf16.msra.mxu0 %v749
    %929 = vmatpush.bf16.msra.mxu0 %v745
    %930 = vmatpush.bf16.msra.mxu0 %v741
    %931 = vmatpush.bf16.msra.mxu0 %v737
    %932 = vmatpush.bf16.msra.mxu0 %v733
    %933 = vmatpush.bf16.msra.mxu0 %v729
    %934 = vmatpush.bf16.msra.mxu0 %v725
    %935 = vmatmul.bf16.gmra.mxu0 %v106
    %v936 = vpop.f32.mrf.mxu0
    %v937 = vadd.f32 %v923, %v936
    %v938 = vpop.f32.mrf.mxu0
    %v939 = vadd.f32 %v925, %v938
    %940 = vdwg.mxu0
    %941 = vmatpush.bf16.msra.mxu0 %v658
    %942 = vmatpush.bf16.msra.mxu0 %v654
    %943 = vmatpush.bf16.msra.mxu0 %v650
    %944 = vmatpush.bf16.msra.mxu0 %v646
    %945 = vmatpush.bf16.msra.mxu0 %v642
    %946 = vmatpush.bf16.msra.mxu0 %v638
    %947 = vmatpush.bf16.msra.mxu0 %v634
    %948 = vmatpush.bf16.msra.mxu0 %v630
    %949 = vmatmul.bf16.gmra.mxu0 %v103
    %v950 = vpop.f32.mrf.mxu0
    %v951 = vadd.f32 %v238, %v950
    %v952 = vpop.f32.mrf.mxu0
    %v953 = vadd.f32 %v238, %v952
    %954 = vdwg.mxu0
    %955 = vmatpush.bf16.msra.mxu0 %v690
    %956 = vmatpush.bf16.msra.mxu0 %v686
    %957 = vmatpush.bf16.msra.mxu0 %v682
    %958 = vmatpush.bf16.msra.mxu0 %v678
    %959 = vmatpush.bf16.msra.mxu0 %v674
    %960 = vmatpush.bf16.msra.mxu0 %v670
    %961 = vmatpush.bf16.msra.mxu0 %v666
    %962 = vmatpush.bf16.msra.mxu0 %v662
    %963 = vmatmul.bf16.gmra.mxu0 %v104
    %v964 = vpop.f32.mrf.mxu0
    %v965 = vadd.f32 %v951, %v964
    %v966 = vpop.f32.mrf.mxu0
    %v967 = vadd.f32 %v953, %v966
    %968 = vdwg.mxu0
    %969 = vmatpush.bf16.msra.mxu0 %v722
    %970 = vmatpush.bf16.msra.mxu0 %v718
    %971 = vmatpush.bf16.msra.mxu0 %v714
    %972 = vmatpush.bf16.msra.mxu0 %v710
    %973 = vmatpush.bf16.msra.mxu0 %v706
    %974 = vmatpush.bf16.msra.mxu0 %v702
    %975 = vmatpush.bf16.msra.mxu0 %v698
    %976 = vmatpush.bf16.msra.mxu0 %v694
    %977 = vmatmul.bf16.gmra.mxu0 %v105
    %v978 = vpop.f32.mrf.mxu0
    %v979 = vadd.f32 %v965, %v978
    %v980 = vpop.f32.mrf.mxu0
    %v981 = vadd.f32 %v967, %v980
    %982 = vdwg.mxu0
    %983 = vmatpush.bf16.msra.mxu0 %v754
    %984 = vmatpush.bf16.msra.mxu0 %v750
    %985 = vmatpush.bf16.msra.mxu0 %v746
    %986 = vmatpush.bf16.msra.mxu0 %v742
    %987 = vmatpush.bf16.msra.mxu0 %v738
    %988 = vmatpush.bf16.msra.mxu0 %v734
    %989 = vmatpush.bf16.msra.mxu0 %v730
    %990 = vmatpush.bf16.msra.mxu0 %v726
    %991 = vmatmul.bf16.gmra.mxu0 %v106
    %v992 = vpop.f32.mrf.mxu0
    %v993 = vadd.f32 %v979, %v992
    %v994 = vpop.f32.mrf.mxu0
    %v995 = vadd.f32 %v981, %v994
    %996 = vdwg.mxu0
    %997 = vmatpush.bf16.msra.mxu0 %v659
    %998 = vmatpush.bf16.msra.mxu0 %v655
    %999 = vmatpush.bf16.msra.mxu0 %v651
    %1000 = vmatpush.bf16.msra.mxu0 %v647
    %1001 = vmatpush.bf16.msra.mxu0 %v643
    %1002 = vmatpush.bf16.msra.mxu0 %v639
    %1003 = vmatpush.bf16.msra.mxu0 %v635
    %1004 = vmatpush.bf16.msra.mxu0 %v631
    %1005 = vmatmul.bf16.gmra.mxu0 %v103
    %v1006 = vpop.f32.mrf.mxu0
    %v1007 = vadd.f32 %v239, %v1006
    %v1008 = vpop.f32.mrf.mxu0
    %v1009 = vadd.f32 %v239, %v1008
    %1010 = vdwg.mxu0
    %1011 = vmatpush.bf16.msra.mxu0 %v691
    %1012 = vmatpush.bf16.msra.mxu0 %v687
    %1013 = vmatpush.bf16.msra.mxu0 %v683
    %1014 = vmatpush.bf16.msra.mxu0 %v679
    %1015 = vmatpush.bf16.msra.mxu0 %v675
    %1016 = vmatpush.bf16.msra.mxu0 %v671
    %1017 = vmatpush.bf16.msra.mxu0 %v667
    %1018 = vmatpush.bf16.msra.mxu0 %v663
    %1019 = vmatmul.bf16.gmra.mxu0 %v104
    %v1020 = vpop.f32.mrf.mxu0
    %v1021 = vadd.f32 %v1007, %v1020
    %v1022 = vpop.f32.mrf.mxu0
    %v1023 = vadd.f32 %v1009, %v1022
    %1024 = vdwg.mxu0
    %1025 = vmatpush.bf16.msra.mxu0 %v723
    %1026 = vmatpush.bf16.msra.mxu0 %v719
    %1027 = vmatpush.bf16.msra.mxu0 %v715
    %1028 = vmatpush.bf16.msra.mxu0 %v711
    %1029 = vmatpush.bf16.msra.mxu0 %v707
    %1030 = vmatpush.bf16.msra.mxu0 %v703
    %1031 = vmatpush.bf16.msra.mxu0 %v699
    %1032 = vmatpush.bf16.msra.mxu0 %v695
    %1033 = vmatmul.bf16.gmra.mxu0 %v105
    %v1034 = vpop.f32.mrf.mxu0
    %v1035 = vadd.f32 %v1021, %v1034
    %v1036 = vpop.f32.mrf.mxu0
    %v1037 = vadd.f32 %v1023, %v1036
    %1038 = vdwg.mxu0
    %1039 = vmatpush.bf16.msra.mxu0 %v755
    %1040 = vmatpush.bf16.msra.mxu0 %v751
    %1041 = vmatpush.bf16.msra.mxu0 %v747
    %1042 = vmatpush.bf16.msra.mxu0 %v743
    %1043 = vmatpush.bf16.msra.mxu0 %v739
    %1044 = vmatpush.bf16.msra.mxu0 %v735
    %1045 = vmatpush.bf16.msra.mxu0 %v731
    %1046 = vmatpush.bf16.msra.mxu0 %v727
    %1047 = vmatmul.bf16.gmra.mxu0 %v106
    %v1048 = vpop.f32.mrf.mxu0
    %v1049 = vadd.f32 %v1035, %v1048
    %v1050 = vpop.f32.mrf.mxu0
    %v1051 = vadd.f32 %v1037, %v1050
    %1052 = vdwg.mxu0
    %1053 = vmatpush.bf16.msra.mxu0 %v660
    %1054 = vmatpush.bf16.msra.mxu0 %v656
    %1055 = vmatpush.bf16.msra.mxu0 %v652
    %1056 = vmatpush.bf16.msra.mxu0 %v648
    %1057 = vmatpush.bf16.msra.mxu0 %v644
    %1058 = vmatpush.bf16.msra.mxu0 %v640
    %1059 = vmatpush.bf16.msra.mxu0 %v636
    %1060 = vmatpush.bf16.msra.mxu0 %v632
    %1061 = vmatmul.bf16.gmra.mxu0 %v103
    %v1062 = vpop.f32.mrf.mxu0
    %v1063 = vadd.f32 %v240, %v1062
    %v1064 = vpop.f32.mrf.mxu0
    %v1065 = vadd.f32 %v240, %v1064
    %1066 = vdwg.mxu0
    %1067 = vmatpush.bf16.msra.mxu0 %v692
    %1068 = vmatpush.bf16.msra.mxu0 %v688
    %1069 = vmatpush.bf16.msra.mxu0 %v684
    %1070 = vmatpush.bf16.msra.mxu0 %v680
    %1071 = vmatpush.bf16.msra.mxu0 %v676
    %1072 = vmatpush.bf16.msra.mxu0 %v672
    %1073 = vmatpush.bf16.msra.mxu0 %v668
    %1074 = vmatpush.bf16.msra.mxu0 %v664
    %1075 = vmatmul.bf16.gmra.mxu0 %v104
    %v1076 = vpop.f32.mrf.mxu0
    %v1077 = vadd.f32 %v1063, %v1076
    %v1078 = vpop.f32.mrf.mxu0
    %v1079 = vadd.f32 %v1065, %v1078
    %1080 = vdwg.mxu0
    %1081 = vmatpush.bf16.msra.mxu0 %v724
    %1082 = vmatpush.bf16.msra.mxu0 %v720
    %1083 = vmatpush.bf16.msra.mxu0 %v716
    %1084 = vmatpush.bf16.msra.mxu0 %v712
    %1085 = vmatpush.bf16.msra.mxu0 %v708
    %1086 = vmatpush.bf16.msra.mxu0 %v704
    %1087 = vmatpush.bf16.msra.mxu0 %v700
    %1088 = vmatpush.bf16.msra.mxu0 %v696
    %1089 = vmatmul.bf16.gmra.mxu0 %v105
    %v1090 = vpop.f32.mrf.mxu0
    %v1091 = vadd.f32 %v1077, %v1090
    %v1092 = vpop.f32.mrf.mxu0
    %v1093 = vadd.f32 %v1079, %v1092
    %1094 = vdwg.mxu0
    %1095 = vmatpush.bf16.msra.mxu0 %v756
    %1096 = vmatpush.bf16.msra.mxu0 %v752
    %1097 = vmatpush.bf16.msra.mxu0 %v748
    %1098 = vmatpush.bf16.msra.mxu0 %v744
    %1099 = vmatpush.bf16.msra.mxu0 %v740
    %1100 = vmatpush.bf16.msra.mxu0 %v736
    %1101 = vmatpush.bf16.msra.mxu0 %v732
    %1102 = vmatpush.bf16.msra.mxu0 %v728
    %1103 = vmatmul.bf16.gmra.mxu0 %v106
    %v1104 = vpop.f32.mrf.mxu0
    %v1105 = vadd.f32 %v1091, %v1104
    %v1106 = vpop.f32.mrf.mxu0
    %v1107 = vadd.f32 %v1093, %v1106
    %1108 = vdwg.mxu0
    %v1109 = vmax.f32 %v937, 0.0
    %v1110 = vmax.f32 %v993, 0.0
    %v1111 = vmax.f32 %v1049, 0.0
    %v1112 = vmax.f32 %v1105, 0.0
    %v1113 = vmax.f32 %v939, 0.0
    %v1114 = vmax.f32 %v995, 0.0
    %v1115 = vmax.f32 %v1051, 0.0
    %v1116 = vmax.f32 %v1107, 0.0
    %v1117 = vpack.c.bf16 %v1113, %v1109
    %v1118 = vpack.c.bf16 %v1114, %v1110
    %v1119 = vpack.c.bf16 %v1115, %v1111
    %v1120 = vpack.c.bf16 %v1116, %v1112
    %v1121 = vld [vmem:[#allocation8] sm:$0xff]
    %v1122 = vld [vmem:[#allocation8 + $0x8] sm:$0xff]
    %v1123 = vld [vmem:[#allocation8 + $0x10] sm:$0xff]
    %v1124 = vld [vmem:[#allocation8 + $0x18] sm:$0xff]
    %v1125 = vld [vmem:[#allocation8 + $0x20] sm:$0xff]
    %v1126 = vld [vmem:[#allocation8 + $0x28] sm:$0xff]
    %v1127 = vld [vmem:[#allocation8 + $0x30] sm:$0xff]
    %v1128 = vld [vmem:[#allocation8 + $0x38] sm:$0xff]
    %v1129 = vld [vmem:[#allocation8 + $0x40] sm:$0xff]
    %v1130 = vld [vmem:[#allocation8 + $0x48] sm:$0xff]
    %v1131 = vld [vmem:[#allocation8 + $0x50] sm:$0xff]
    %v1132 = vld [vmem:[#allocation8 + $0x58] sm:$0xff]
    %v1133 = vld [vmem:[#allocation8 + $0x60] sm:$0xff]
    %v1134 = vld [vmem:[#allocation8 + $0x68] sm:$0xff]
    %v1135 = vld [vmem:[#allocation8 + $0x70] sm:$0xff]
    %v1136 = vld [vmem:[#allocation8 + $0x78] sm:$0xff]
    %v1137 = vld [vmem:[#allocation8 + $0x80] sm:$0xff]
    %v1138 = vld [vmem:[#allocation8 + $0x88] sm:$0xff]
    %v1139 = vld [vmem:[#allocation8 + $0x90] sm:$0xff]
    %v1140 = vld [vmem:[#allocation8 + $0x98] sm:$0xff]
    %v1141 = vld [vmem:[#allocation8 + $0xa0] sm:$0xff]
    %v1142 = vld [vmem:[#allocation8 + $0xa8] sm:$0xff]
    %v1143 = vld [vmem:[#allocation8 + $0xb0] sm:$0xff]
    %v1144 = vld [vmem:[#allocation8 + $0xb8] sm:$0xff]
    %v1145 = vld [vmem:[#allocation8 + $0xc0] sm:$0xff]
    %v1146 = vld [vmem:[#allocation8 + $0xc8] sm:$0xff]
    %v1147 = vld [vmem:[#allocation8 + $0xd0] sm:$0xff]
    %v1148 = vld [vmem:[#allocation8 + $0xd8] sm:$0xff]
    %v1149 = vld [vmem:[#allocation8 + $0xe0] sm:$0xff]
    %v1150 = vld [vmem:[#allocation8 + $0xe8] sm:$0xff]
    %v1151 = vld [vmem:[#allocation8 + $0xf0] sm:$0xff]
    %v1152 = vld [vmem:[#allocation8 + $0xf8] sm:$0xff]
    %v1153 = vld [vmem:[#allocation8 + $0x100] sm:$0xff]
    %v1154 = vld [vmem:[#allocation8 + $0x108] sm:$0xff]
    %v1155 = vld [vmem:[#allocation8 + $0x110] sm:$0xff]
    %v1156 = vld [vmem:[#allocation8 + $0x118] sm:$0xff]
    %v1157 = vld [vmem:[#allocation8 + $0x120] sm:$0xff]
    %v1158 = vld [vmem:[#allocation8 + $0x128] sm:$0xff]
    %v1159 = vld [vmem:[#allocation8 + $0x130] sm:$0xff]
    %v1160 = vld [vmem:[#allocation8 + $0x138] sm:$0xff]
    %v1161 = vld [vmem:[#allocation8 + $0x140] sm:$0xff]
    %v1162 = vld [vmem:[#allocation8 + $0x148] sm:$0xff]
    %v1163 = vld [vmem:[#allocation8 + $0x150] sm:$0xff]
    %v1164 = vld [vmem:[#allocation8 + $0x158] sm:$0xff]
    %v1165 = vld [vmem:[#allocation8 + $0x160] sm:$0xff]
    %v1166 = vld [vmem:[#allocation8 + $0x168] sm:$0xff]
    %v1167 = vld [vmem:[#allocation8 + $0x170] sm:$0xff]
    %v1168 = vld [vmem:[#allocation8 + $0x178] sm:$0xff]
    %v1169 = vld [vmem:[#allocation8 + $0x180] sm:$0xff]
    %v1170 = vld [vmem:[#allocation8 + $0x188] sm:$0xff]
    %v1171 = vld [vmem:[#allocation8 + $0x190] sm:$0xff]
    %v1172 = vld [vmem:[#allocation8 + $0x198] sm:$0xff]
    %v1173 = vld [vmem:[#allocation8 + $0x1a0] sm:$0xff]
    %v1174 = vld [vmem:[#allocation8 + $0x1a8] sm:$0xff]
    %v1175 = vld [vmem:[#allocation8 + $0x1b0] sm:$0xff]
    %v1176 = vld [vmem:[#allocation8 + $0x1b8] sm:$0xff]
    %v1177 = vld [vmem:[#allocation8 + $0x1c0] sm:$0xff]
    %v1178 = vld [vmem:[#allocation8 + $0x1c8] sm:$0xff]
    %v1179 = vld [vmem:[#allocation8 + $0x1d0] sm:$0xff]
    %v1180 = vld [vmem:[#allocation8 + $0x1d8] sm:$0xff]
    %v1181 = vld [vmem:[#allocation8 + $0x1e0] sm:$0xff]
    %v1182 = vld [vmem:[#allocation8 + $0x1e8] sm:$0xff]
    %v1183 = vld [vmem:[#allocation8 + $0x1f0] sm:$0xff]
    %v1184 = vld [vmem:[#allocation8 + $0x1f8] sm:$0xff]
    %v1185 = vld [vmem:[#allocation8 + $0x200] sm:$0xff]
    %v1186 = vld [vmem:[#allocation8 + $0x208] sm:$0xff]
    %v1187 = vld [vmem:[#allocation8 + $0x210] sm:$0xff]
    %v1188 = vld [vmem:[#allocation8 + $0x218] sm:$0xff]
    %v1189 = vld [vmem:[#allocation8 + $0x220] sm:$0xff]
    %v1190 = vld [vmem:[#allocation8 + $0x228] sm:$0xff]
    %v1191 = vld [vmem:[#allocation8 + $0x230] sm:$0xff]
    %v1192 = vld [vmem:[#allocation8 + $0x238] sm:$0xff]
    %v1193 = vld [vmem:[#allocation8 + $0x240] sm:$0xff]
    %v1194 = vld [vmem:[#allocation8 + $0x248] sm:$0xff]
    %v1195 = vld [vmem:[#allocation8 + $0x250] sm:$0xff]
    %v1196 = vld [vmem:[#allocation8 + $0x258] sm:$0xff]
    %v1197 = vld [vmem:[#allocation8 + $0x260] sm:$0xff]
    %v1198 = vld [vmem:[#allocation8 + $0x268] sm:$0xff]
    %v1199 = vld [vmem:[#allocation8 + $0x270] sm:$0xff]
    %v1200 = vld [vmem:[#allocation8 + $0x278] sm:$0xff]
    %v1201 = vld [vmem:[#allocation8 + $0x280] sm:$0xff]
    %v1202 = vld [vmem:[#allocation8 + $0x288] sm:$0xff]
    %v1203 = vld [vmem:[#allocation8 + $0x290] sm:$0xff]
    %v1204 = vld [vmem:[#allocation8 + $0x298] sm:$0xff]
    %v1205 = vld [vmem:[#allocation8 + $0x2a0] sm:$0xff]
    %v1206 = vld [vmem:[#allocation8 + $0x2a8] sm:$0xff]
    %v1207 = vld [vmem:[#allocation8 + $0x2b0] sm:$0xff]
    %v1208 = vld [vmem:[#allocation8 + $0x2b8] sm:$0xff]
    %v1209 = vld [vmem:[#allocation8 + $0x2c0] sm:$0xff]
    %v1210 = vld [vmem:[#allocation8 + $0x2c8] sm:$0xff]
    %v1211 = vld [vmem:[#allocation8 + $0x2d0] sm:$0xff]
    %v1212 = vld [vmem:[#allocation8 + $0x2d8] sm:$0xff]
    %v1213 = vld [vmem:[#allocation8 + $0x2e0] sm:$0xff]
    %v1214 = vld [vmem:[#allocation8 + $0x2e8] sm:$0xff]
    %v1215 = vld [vmem:[#allocation8 + $0x2f0] sm:$0xff]
    %v1216 = vld [vmem:[#allocation8 + $0x2f8] sm:$0xff]
    %v1217 = vld [vmem:[#allocation8 + $0x300] sm:$0xff]
    %v1218 = vld [vmem:[#allocation8 + $0x308] sm:$0xff]
    %v1219 = vld [vmem:[#allocation8 + $0x310] sm:$0xff]
    %v1220 = vld [vmem:[#allocation8 + $0x318] sm:$0xff]
    %v1221 = vld [vmem:[#allocation8 + $0x320] sm:$0xff]
    %v1222 = vld [vmem:[#allocation8 + $0x328] sm:$0xff]
    %v1223 = vld [vmem:[#allocation8 + $0x330] sm:$0xff]
    %v1224 = vld [vmem:[#allocation8 + $0x338] sm:$0xff]
    %v1225 = vld [vmem:[#allocation8 + $0x340] sm:$0xff]
    %v1226 = vld [vmem:[#allocation8 + $0x348] sm:$0xff]
    %v1227 = vld [vmem:[#allocation8 + $0x350] sm:$0xff]
    %v1228 = vld [vmem:[#allocation8 + $0x358] sm:$0xff]
    %v1229 = vld [vmem:[#allocation8 + $0x360] sm:$0xff]
    %v1230 = vld [vmem:[#allocation8 + $0x368] sm:$0xff]
    %v1231 = vld [vmem:[#allocation8 + $0x370] sm:$0xff]
    %v1232 = vld [vmem:[#allocation8 + $0x378] sm:$0xff]
    %v1233 = vld [vmem:[#allocation8 + $0x380] sm:$0xff]
    %v1234 = vld [vmem:[#allocation8 + $0x388] sm:$0xff]
    %v1235 = vld [vmem:[#allocation8 + $0x390] sm:$0xff]
    %v1236 = vld [vmem:[#allocation8 + $0x398] sm:$0xff]
    %v1237 = vld [vmem:[#allocation8 + $0x3a0] sm:$0xff]
    %v1238 = vld [vmem:[#allocation8 + $0x3a8] sm:$0xff]
    %v1239 = vld [vmem:[#allocation8 + $0x3b0] sm:$0xff]
    %v1240 = vld [vmem:[#allocation8 + $0x3b8] sm:$0xff]
    %v1241 = vld [vmem:[#allocation8 + $0x3c0] sm:$0xff]
    %v1242 = vld [vmem:[#allocation8 + $0x3c8] sm:$0xff]
    %v1243 = vld [vmem:[#allocation8 + $0x3d0] sm:$0xff]
    %v1244 = vld [vmem:[#allocation8 + $0x3d8] sm:$0xff]
    %v1245 = vld [vmem:[#allocation8 + $0x3e0] sm:$0xff]
    %v1246 = vld [vmem:[#allocation8 + $0x3e8] sm:$0xff]
    %v1247 = vld [vmem:[#allocation8 + $0x3f0] sm:$0xff]
    %v1248 = vld [vmem:[#allocation8 + $0x3f8] sm:$0xff]
    %v1249 = vld [vmem:[#allocation10] sm:$0xf]
    %v1251 = vperm.slane %v1249, 0
    %v1252 = vperm.slane %v1249, 1
    %v1253 = vperm.slane %v1249, 2
    %v1254 = vperm.slane %v1249, 3
    %v1387 = vunpack.c.l.b16 %v1121
    %v1388 = vunpack.c.h.b16 %v1121
    %v1389 = vunpack.c.l.b16 %v1122
    %v1390 = vunpack.c.h.b16 %v1122
    %v1391 = vunpack.c.l.b16 %v1123
    %v1392 = vunpack.c.h.b16 %v1123
    %v1393 = vunpack.c.l.b16 %v1124
    %v1394 = vunpack.c.h.b16 %v1124
    %v1395 = vunpack.c.l.b16 %v1125
    %v1396 = vunpack.c.h.b16 %v1125
    %v1397 = vunpack.c.l.b16 %v1126
    %v1398 = vunpack.c.h.b16 %v1126
    %v1399 = vunpack.c.l.b16 %v1127
    %v1400 = vunpack.c.h.b16 %v1127
    %v1401 = vunpack.c.l.b16 %v1128
    %v1402 = vunpack.c.h.b16 %v1128
    %v1403 = vunpack.c.l.b16 %v1129
    %v1404 = vunpack.c.h.b16 %v1129
    %v1405 = vunpack.c.l.b16 %v1130
    %v1406 = vunpack.c.h.b16 %v1130
    %v1407 = vunpack.c.l.b16 %v1131
    %v1408 = vunpack.c.h.b16 %v1131
    %v1409 = vunpack.c.l.b16 %v1132
    %v1410 = vunpack.c.h.b16 %v1132
    %v1411 = vunpack.c.l.b16 %v1133
    %v1412 = vunpack.c.h.b16 %v1133
    %v1413 = vunpack.c.l.b16 %v1134
    %v1414 = vunpack.c.h.b16 %v1134
    %v1415 = vunpack.c.l.b16 %v1135
    %v1416 = vunpack.c.h.b16 %v1135
    %v1417 = vunpack.c.l.b16 %v1136
    %v1418 = vunpack.c.h.b16 %v1136
    %v1419 = vunpack.c.l.b16 %v1137
    %v1420 = vunpack.c.h.b16 %v1137
    %v1421 = vunpack.c.l.b16 %v1138
    %v1422 = vunpack.c.h.b16 %v1138
    %v1423 = vunpack.c.l.b16 %v1139
    %v1424 = vunpack.c.h.b16 %v1139
    %v1425 = vunpack.c.l.b16 %v1140
    %v1426 = vunpack.c.h.b16 %v1140
    %v1427 = vunpack.c.l.b16 %v1141
    %v1428 = vunpack.c.h.b16 %v1141
    %v1429 = vunpack.c.l.b16 %v1142
    %v1430 = vunpack.c.h.b16 %v1142
    %v1431 = vunpack.c.l.b16 %v1143
    %v1432 = vunpack.c.h.b16 %v1143
    %v1433 = vunpack.c.l.b16 %v1144
    %v1434 = vunpack.c.h.b16 %v1144
    %v1435 = vunpack.c.l.b16 %v1145
    %v1436 = vunpack.c.h.b16 %v1145
    %v1437 = vunpack.c.l.b16 %v1146
    %v1438 = vunpack.c.h.b16 %v1146
    %v1439 = vunpack.c.l.b16 %v1147
    %v1440 = vunpack.c.h.b16 %v1147
    %v1441 = vunpack.c.l.b16 %v1148
    %v1442 = vunpack.c.h.b16 %v1148
    %v1443 = vunpack.c.l.b16 %v1149
    %v1444 = vunpack.c.h.b16 %v1149
    %v1445 = vunpack.c.l.b16 %v1150
    %v1446 = vunpack.c.h.b16 %v1150
    %v1447 = vunpack.c.l.b16 %v1151
    %v1448 = vunpack.c.h.b16 %v1151
    %v1449 = vunpack.c.l.b16 %v1152
    %v1450 = vunpack.c.h.b16 %v1152
    %v1451 = vunpack.c.l.b16 %v1153
    %v1452 = vunpack.c.h.b16 %v1153
    %v1453 = vunpack.c.l.b16 %v1154
    %v1454 = vunpack.c.h.b16 %v1154
    %v1455 = vunpack.c.l.b16 %v1155
    %v1456 = vunpack.c.h.b16 %v1155
    %v1457 = vunpack.c.l.b16 %v1156
    %v1458 = vunpack.c.h.b16 %v1156
    %v1459 = vunpack.c.l.b16 %v1157
    %v1460 = vunpack.c.h.b16 %v1157
    %v1461 = vunpack.c.l.b16 %v1158
    %v1462 = vunpack.c.h.b16 %v1158
    %v1463 = vunpack.c.l.b16 %v1159
    %v1464 = vunpack.c.h.b16 %v1159
    %v1465 = vunpack.c.l.b16 %v1160
    %v1466 = vunpack.c.h.b16 %v1160
    %v1467 = vunpack.c.l.b16 %v1161
    %v1468 = vunpack.c.h.b16 %v1161
    %v1469 = vunpack.c.l.b16 %v1162
    %v1470 = vunpack.c.h.b16 %v1162
    %v1471 = vunpack.c.l.b16 %v1163
    %v1472 = vunpack.c.h.b16 %v1163
    %v1473 = vunpack.c.l.b16 %v1164
    %v1474 = vunpack.c.h.b16 %v1164
    %v1475 = vunpack.c.l.b16 %v1165
    %v1476 = vunpack.c.h.b16 %v1165
    %v1477 = vunpack.c.l.b16 %v1166
    %v1478 = vunpack.c.h.b16 %v1166
    %v1479 = vunpack.c.l.b16 %v1167
    %v1480 = vunpack.c.h.b16 %v1167
    %v1481 = vunpack.c.l.b16 %v1168
    %v1482 = vunpack.c.h.b16 %v1168
    %v1483 = vunpack.c.l.b16 %v1169
    %v1484 = vunpack.c.h.b16 %v1169
    %v1485 = vunpack.c.l.b16 %v1170
    %v1486 = vunpack.c.h.b16 %v1170
    %v1487 = vunpack.c.l.b16 %v1171
    %v1488 = vunpack.c.h.b16 %v1171
    %v1489 = vunpack.c.l.b16 %v1172
    %v1490 = vunpack.c.h.b16 %v1172
    %v1491 = vunpack.c.l.b16 %v1173
    %v1492 = vunpack.c.h.b16 %v1173
    %v1493 = vunpack.c.l.b16 %v1174
    %v1494 = vunpack.c.h.b16 %v1174
    %v1495 = vunpack.c.l.b16 %v1175
    %v1496 = vunpack.c.h.b16 %v1175
    %v1497 = vunpack.c.l.b16 %v1176
    %v1498 = vunpack.c.h.b16 %v1176
    %v1499 = vunpack.c.l.b16 %v1177
    %v1500 = vunpack.c.h.b16 %v1177
    %v1501 = vunpack.c.l.b16 %v1178
    %v1502 = vunpack.c.h.b16 %v1178
    %v1503 = vunpack.c.l.b16 %v1179
    %v1504 = vunpack.c.h.b16 %v1179
    %v1505 = vunpack.c.l.b16 %v1180
    %v1506 = vunpack.c.h.b16 %v1180
    %v1507 = vunpack.c.l.b16 %v1181
    %v1508 = vunpack.c.h.b16 %v1181
    %v1509 = vunpack.c.l.b16 %v1182
    %v1510 = vunpack.c.h.b16 %v1182
    %v1511 = vunpack.c.l.b16 %v1183
    %v1512 = vunpack.c.h.b16 %v1183
    %v1513 = vunpack.c.l.b16 %v1184
    %v1514 = vunpack.c.h.b16 %v1184
    %v1515 = vunpack.c.l.b16 %v1185
    %v1516 = vunpack.c.h.b16 %v1185
    %v1517 = vunpack.c.l.b16 %v1186
    %v1518 = vunpack.c.h.b16 %v1186
    %v1519 = vunpack.c.l.b16 %v1187
    %v1520 = vunpack.c.h.b16 %v1187
    %v1521 = vunpack.c.l.b16 %v1188
    %v1522 = vunpack.c.h.b16 %v1188
    %v1523 = vunpack.c.l.b16 %v1189
    %v1524 = vunpack.c.h.b16 %v1189
    %v1525 = vunpack.c.l.b16 %v1190
    %v1526 = vunpack.c.h.b16 %v1190
    %v1527 = vunpack.c.l.b16 %v1191
    %v1528 = vunpack.c.h.b16 %v1191
    %v1529 = vunpack.c.l.b16 %v1192
    %v1530 = vunpack.c.h.b16 %v1192
    %v1531 = vunpack.c.l.b16 %v1193
    %v1532 = vunpack.c.h.b16 %v1193
    %v1533 = vunpack.c.l.b16 %v1194
    %v1534 = vunpack.c.h.b16 %v1194
    %v1535 = vunpack.c.l.b16 %v1195
    %v1536 = vunpack.c.h.b16 %v1195
    %v1537 = vunpack.c.l.b16 %v1196
    %v1538 = vunpack.c.h.b16 %v1196
    %v1539 = vunpack.c.l.b16 %v1197
    %v1540 = vunpack.c.h.b16 %v1197
    %v1541 = vunpack.c.l.b16 %v1198
    %v1542 = vunpack.c.h.b16 %v1198
    %v1543 = vunpack.c.l.b16 %v1199
    %v1544 = vunpack.c.h.b16 %v1199
    %v1545 = vunpack.c.l.b16 %v1200
    %v1546 = vunpack.c.h.b16 %v1200
    %v1547 = vunpack.c.l.b16 %v1201
    %v1548 = vunpack.c.h.b16 %v1201
    %v1549 = vunpack.c.l.b16 %v1202
    %v1550 = vunpack.c.h.b16 %v1202
    %v1551 = vunpack.c.l.b16 %v1203
    %v1552 = vunpack.c.h.b16 %v1203
    %v1553 = vunpack.c.l.b16 %v1204
    %v1554 = vunpack.c.h.b16 %v1204
    %v1555 = vunpack.c.l.b16 %v1205
    %v1556 = vunpack.c.h.b16 %v1205
    %v1557 = vunpack.c.l.b16 %v1206
    %v1558 = vunpack.c.h.b16 %v1206
    %v1559 = vunpack.c.l.b16 %v1207
    %v1560 = vunpack.c.h.b16 %v1207
    %v1561 = vunpack.c.l.b16 %v1208
    %v1562 = vunpack.c.h.b16 %v1208
    %v1563 = vunpack.c.l.b16 %v1209
    %v1564 = vunpack.c.h.b16 %v1209
    %v1565 = vunpack.c.l.b16 %v1210
    %v1566 = vunpack.c.h.b16 %v1210
    %v1567 = vunpack.c.l.b16 %v1211
    %v1568 = vunpack.c.h.b16 %v1211
    %v1569 = vunpack.c.l.b16 %v1212
    %v1570 = vunpack.c.h.b16 %v1212
    %v1571 = vunpack.c.l.b16 %v1213
    %v1572 = vunpack.c.h.b16 %v1213
    %v1573 = vunpack.c.l.b16 %v1214
    %v1574 = vunpack.c.h.b16 %v1214
    %v1575 = vunpack.c.l.b16 %v1215
    %v1576 = vunpack.c.h.b16 %v1215
    %v1577 = vunpack.c.l.b16 %v1216
    %v1578 = vunpack.c.h.b16 %v1216
    %v1579 = vunpack.c.l.b16 %v1217
    %v1580 = vunpack.c.h.b16 %v1217
    %v1581 = vunpack.c.l.b16 %v1218
    %v1582 = vunpack.c.h.b16 %v1218
    %v1583 = vunpack.c.l.b16 %v1219
    %v1584 = vunpack.c.h.b16 %v1219
    %v1585 = vunpack.c.l.b16 %v1220
    %v1586 = vunpack.c.h.b16 %v1220
    %v1587 = vunpack.c.l.b16 %v1221
    %v1588 = vunpack.c.h.b16 %v1221
    %v1589 = vunpack.c.l.b16 %v1222
    %v1590 = vunpack.c.h.b16 %v1222
    %v1591 = vunpack.c.l.b16 %v1223
    %v1592 = vunpack.c.h.b16 %v1223
    %v1593 = vunpack.c.l.b16 %v1224
    %v1594 = vunpack.c.h.b16 %v1224
    %v1595 = vunpack.c.l.b16 %v1225
    %v1596 = vunpack.c.h.b16 %v1225
    %v1597 = vunpack.c.l.b16 %v1226
    %v1598 = vunpack.c.h.b16 %v1226
    %v1599 = vunpack.c.l.b16 %v1227
    %v1600 = vunpack.c.h.b16 %v1227
    %v1601 = vunpack.c.l.b16 %v1228
    %v1602 = vunpack.c.h.b16 %v1228
    %v1603 = vunpack.c.l.b16 %v1229
    %v1604 = vunpack.c.h.b16 %v1229
    %v1605 = vunpack.c.l.b16 %v1230
    %v1606 = vunpack.c.h.b16 %v1230
    %v1607 = vunpack.c.l.b16 %v1231
    %v1608 = vunpack.c.h.b16 %v1231
    %v1609 = vunpack.c.l.b16 %v1232
    %v1610 = vunpack.c.h.b16 %v1232
    %v1611 = vunpack.c.l.b16 %v1233
    %v1612 = vunpack.c.h.b16 %v1233
    %v1613 = vunpack.c.l.b16 %v1234
    %v1614 = vunpack.c.h.b16 %v1234
    %v1615 = vunpack.c.l.b16 %v1235
    %v1616 = vunpack.c.h.b16 %v1235
    %v1617 = vunpack.c.l.b16 %v1236
    %v1618 = vunpack.c.h.b16 %v1236
    %v1619 = vunpack.c.l.b16 %v1237
    %v1620 = vunpack.c.h.b16 %v1237
    %v1621 = vunpack.c.l.b16 %v1238
    %v1622 = vunpack.c.h.b16 %v1238
    %v1623 = vunpack.c.l.b16 %v1239
    %v1624 = vunpack.c.h.b16 %v1239
    %v1625 = vunpack.c.l.b16 %v1240
    %v1626 = vunpack.c.h.b16 %v1240
    %v1627 = vunpack.c.l.b16 %v1241
    %v1628 = vunpack.c.h.b16 %v1241
    %v1629 = vunpack.c.l.b16 %v1242
    %v1630 = vunpack.c.h.b16 %v1242
    %v1631 = vunpack.c.l.b16 %v1243
    %v1632 = vunpack.c.h.b16 %v1243
    %v1633 = vunpack.c.l.b16 %v1244
    %v1634 = vunpack.c.h.b16 %v1244
    %v1635 = vunpack.c.l.b16 %v1245
    %v1636 = vunpack.c.h.b16 %v1245
    %v1637 = vunpack.c.l.b16 %v1246
    %v1638 = vunpack.c.h.b16 %v1246
    %v1639 = vunpack.c.l.b16 %v1247
    %v1640 = vunpack.c.h.b16 %v1247
    %v1641 = vunpack.c.l.b16 %v1248
    %v1642 = vunpack.c.h.b16 %v1248
    %v1643 = vpack.c.b16 %v1391, %v1387
    %v1644 = vpack.c.b16 %v1392, %v1388
    %v1645 = vpack.c.b16 %v1393, %v1389
    %v1646 = vpack.c.b16 %v1394, %v1390
    %v1647 = vpack.c.b16 %v1399, %v1395
    %v1648 = vpack.c.b16 %v1400, %v1396
    %v1649 = vpack.c.b16 %v1401, %v1397
    %v1650 = vpack.c.b16 %v1402, %v1398
    %v1651 = vpack.c.b16 %v1407, %v1403
    %v1652 = vpack.c.b16 %v1408, %v1404
    %v1653 = vpack.c.b16 %v1409, %v1405
    %v1654 = vpack.c.b16 %v1410, %v1406
    %v1655 = vpack.c.b16 %v1415, %v1411
    %v1656 = vpack.c.b16 %v1416, %v1412
    %v1657 = vpack.c.b16 %v1417, %v1413
    %v1658 = vpack.c.b16 %v1418, %v1414
    %v1659 = vpack.c.b16 %v1423, %v1419
    %v1660 = vpack.c.b16 %v1424, %v1420
    %v1661 = vpack.c.b16 %v1425, %v1421
    %v1662 = vpack.c.b16 %v1426, %v1422
    %v1663 = vpack.c.b16 %v1431, %v1427
    %v1664 = vpack.c.b16 %v1432, %v1428
    %v1665 = vpack.c.b16 %v1433, %v1429
    %v1666 = vpack.c.b16 %v1434, %v1430
    %v1667 = vpack.c.b16 %v1439, %v1435
    %v1668 = vpack.c.b16 %v1440, %v1436
    %v1669 = vpack.c.b16 %v1441, %v1437
    %v1670 = vpack.c.b16 %v1442, %v1438
    %v1671 = vpack.c.b16 %v1447, %v1443
    %v1672 = vpack.c.b16 %v1448, %v1444
    %v1673 = vpack.c.b16 %v1449, %v1445
    %v1674 = vpack.c.b16 %v1450, %v1446
    %v1675 = vpack.c.b16 %v1455, %v1451
    %v1676 = vpack.c.b16 %v1456, %v1452
    %v1677 = vpack.c.b16 %v1457, %v1453
    %v1678 = vpack.c.b16 %v1458, %v1454
    %v1679 = vpack.c.b16 %v1463, %v1459
    %v1680 = vpack.c.b16 %v1464, %v1460
    %v1681 = vpack.c.b16 %v1465, %v1461
    %v1682 = vpack.c.b16 %v1466, %v1462
    %v1683 = vpack.c.b16 %v1471, %v1467
    %v1684 = vpack.c.b16 %v1472, %v1468
    %v1685 = vpack.c.b16 %v1473, %v1469
    %v1686 = vpack.c.b16 %v1474, %v1470
    %v1687 = vpack.c.b16 %v1479, %v1475
    %v1688 = vpack.c.b16 %v1480, %v1476
    %v1689 = vpack.c.b16 %v1481, %v1477
    %v1690 = vpack.c.b16 %v1482, %v1478
    %v1691 = vpack.c.b16 %v1487, %v1483
    %v1692 = vpack.c.b16 %v1488, %v1484
    %v1693 = vpack.c.b16 %v1489, %v1485
    %v1694 = vpack.c.b16 %v1490, %v1486
    %v1695 = vpack.c.b16 %v1495, %v1491
    %v1696 = vpack.c.b16 %v1496, %v1492
    %v1697 = vpack.c.b16 %v1497, %v1493
    %v1698 = vpack.c.b16 %v1498, %v1494
    %v1699 = vpack.c.b16 %v1503, %v1499
    %v1700 = vpack.c.b16 %v1504, %v1500
    %v1701 = vpack.c.b16 %v1505, %v1501
    %v1702 = vpack.c.b16 %v1506, %v1502
    %v1703 = vpack.c.b16 %v1511, %v1507
    %v1704 = vpack.c.b16 %v1512, %v1508
    %v1705 = vpack.c.b16 %v1513, %v1509
    %v1706 = vpack.c.b16 %v1514, %v1510
    %v1707 = vpack.c.b16 %v1519, %v1515
    %v1708 = vpack.c.b16 %v1520, %v1516
    %v1709 = vpack.c.b16 %v1521, %v1517
    %v1710 = vpack.c.b16 %v1522, %v1518
    %v1711 = vpack.c.b16 %v1527, %v1523
    %v1712 = vpack.c.b16 %v1528, %v1524
    %v1713 = vpack.c.b16 %v1529, %v1525
    %v1714 = vpack.c.b16 %v1530, %v1526
    %v1715 = vpack.c.b16 %v1535, %v1531
    %v1716 = vpack.c.b16 %v1536, %v1532
    %v1717 = vpack.c.b16 %v1537, %v1533
    %v1718 = vpack.c.b16 %v1538, %v1534
    %v1719 = vpack.c.b16 %v1543, %v1539
    %v1720 = vpack.c.b16 %v1544, %v1540
    %v1721 = vpack.c.b16 %v1545, %v1541
    %v1722 = vpack.c.b16 %v1546, %v1542
    %v1723 = vpack.c.b16 %v1551, %v1547
    %v1724 = vpack.c.b16 %v1552, %v1548
    %v1725 = vpack.c.b16 %v1553, %v1549
    %v1726 = vpack.c.b16 %v1554, %v1550
    %v1727 = vpack.c.b16 %v1559, %v1555
    %v1728 = vpack.c.b16 %v1560, %v1556
    %v1729 = vpack.c.b16 %v1561, %v1557
    %v1730 = vpack.c.b16 %v1562, %v1558
    %v1731 = vpack.c.b16 %v1567, %v1563
    %v1732 = vpack.c.b16 %v1568, %v1564
    %v1733 = vpack.c.b16 %v1569, %v1565
    %v1734 = vpack.c.b16 %v1570, %v1566
    %v1735 = vpack.c.b16 %v1575, %v1571
    %v1736 = vpack.c.b16 %v1576, %v1572
    %v1737 = vpack.c.b16 %v1577, %v1573
    %v1738 = vpack.c.b16 %v1578, %v1574
    %v1739 = vpack.c.b16 %v1583, %v1579
    %v1740 = vpack.c.b16 %v1584, %v1580
    %v1741 = vpack.c.b16 %v1585, %v1581
    %v1742 = vpack.c.b16 %v1586, %v1582
    %v1743 = vpack.c.b16 %v1591, %v1587
    %v1744 = vpack.c.b16 %v1592, %v1588
    %v1745 = vpack.c.b16 %v1593, %v1589
    %v1746 = vpack.c.b16 %v1594, %v1590
    %v1747 = vpack.c.b16 %v1599, %v1595
    %v1748 = vpack.c.b16 %v1600, %v1596
    %v1749 = vpack.c.b16 %v1601, %v1597
    %v1750 = vpack.c.b16 %v1602, %v1598
    %v1751 = vpack.c.b16 %v1607, %v1603
    %v1752 = vpack.c.b16 %v1608, %v1604
    %v1753 = vpack.c.b16 %v1609, %v1605
    %v1754 = vpack.c.b16 %v1610, %v1606
    %v1755 = vpack.c.b16 %v1615, %v1611
    %v1756 = vpack.c.b16 %v1616, %v1612
    %v1757 = vpack.c.b16 %v1617, %v1613
    %v1758 = vpack.c.b16 %v1618, %v1614
    %v1759 = vpack.c.b16 %v1623, %v1619
    %v1760 = vpack.c.b16 %v1624, %v1620
    %v1761 = vpack.c.b16 %v1625, %v1621
    %v1762 = vpack.c.b16 %v1626, %v1622
    %v1763 = vpack.c.b16 %v1631, %v1627
    %v1764 = vpack.c.b16 %v1632, %v1628
    %v1765 = vpack.c.b16 %v1633, %v1629
    %v1766 = vpack.c.b16 %v1634, %v1630
    %v1767 = vpack.c.b16 %v1639, %v1635
    %v1768 = vpack.c.b16 %v1640, %v1636
    %v1769 = vpack.c.b16 %v1641, %v1637
    %v1770 = vpack.c.b16 %v1642, %v1638
    %1899 = vmatpush.bf16.msra.mxu0 %v1671
    %1900 = vmatpush.bf16.msra.mxu0 %v1667
    %1901 = vmatpush.bf16.msra.mxu0 %v1663
    %1902 = vmatpush.bf16.msra.mxu0 %v1659
    %1903 = vmatpush.bf16.msra.mxu0 %v1655
    %1904 = vmatpush.bf16.msra.mxu0 %v1651
    %1905 = vmatpush.bf16.msra.mxu0 %v1647
    %1906 = vmatpush.bf16.msra.mxu0 %v1643
    %1907 = vmatmul.bf16.gmra.mxu0 %v1117
    %v1908 = vpop.f32.mrf.mxu0
    %v1909 = vadd.f32 %v1251, %v1908
    %v1910 = vpop.f32.mrf.mxu0
    %v1911 = vadd.f32 %v1251, %v1910
    %1912 = vdwg.mxu0
    %1913 = vmatpush.bf16.msra.mxu0 %v1703
    %1914 = vmatpush.bf16.msra.mxu0 %v1699
    %1915 = vmatpush.bf16.msra.mxu0 %v1695
    %1916 = vmatpush.bf16.msra.mxu0 %v1691
    %1917 = vmatpush.bf16.msra.mxu0 %v1687
    %1918 = vmatpush.bf16.msra.mxu0 %v1683
    %1919 = vmatpush.bf16.msra.mxu0 %v1679
    %1920 = vmatpush.bf16.msra.mxu0 %v1675
    %1921 = vmatmul.bf16.gmra.mxu0 %v1118
    %v1922 = vpop.f32.mrf.mxu0
    %v1923 = vadd.f32 %v1909, %v1922
    %v1924 = vpop.f32.mrf.mxu0
    %v1925 = vadd.f32 %v1911, %v1924
    %1926 = vdwg.mxu0
    %1927 = vmatpush.bf16.msra.mxu0 %v1735
    %1928 = vmatpush.bf16.msra.mxu0 %v1731
    %1929 = vmatpush.bf16.msra.mxu0 %v1727
    %1930 = vmatpush.bf16.msra.mxu0 %v1723
    %1931 = vmatpush.bf16.msra.mxu0 %v1719
    %1932 = vmatpush.bf16.msra.mxu0 %v1715
    %1933 = vmatpush.bf16.msra.mxu0 %v1711
    %1934 = vmatpush.bf16.msra.mxu0 %v1707
    %1935 = vmatmul.bf16.gmra.mxu0 %v1119
    %v1936 = vpop.f32.mrf.mxu0
    %v1937 = vadd.f32 %v1923, %v1936
    %v1938 = vpop.f32.mrf.mxu0
    %v1939 = vadd.f32 %v1925, %v1938
    %1940 = vdwg.mxu0
    %1941 = vmatpush.bf16.msra.mxu0 %v1767
    %1942 = vmatpush.bf16.msra.mxu0 %v1763
    %1943 = vmatpush.bf16.msra.mxu0 %v1759
    %1944 = vmatpush.bf16.msra.mxu0 %v1755
    %1945 = vmatpush.bf16.msra.mxu0 %v1751
    %1946 = vmatpush.bf16.msra.mxu0 %v1747
    %1947 = vmatpush.bf16.msra.mxu0 %v1743
    %1948 = vmatpush.bf16.msra.mxu0 %v1739
    %1949 = vmatmul.bf16.gmra.mxu0 %v1120
    %v1950 = vpop.f32.mrf.mxu0
    %v1951 = vadd.f32 %v1937, %v1950
    %v1952 = vpop.f32.mrf.mxu0
    %v1953 = vadd.f32 %v1939, %v1952
    %1954 = vdwg.mxu0
    %1955 = vmatpush.bf16.msra.mxu0 %v1672
    %1956 = vmatpush.bf16.msra.mxu0 %v1668
    %1957 = vmatpush.bf16.msra.mxu0 %v1664
    %1958 = vmatpush.bf16.msra.mxu0 %v1660
    %1959 = vmatpush.bf16.msra.mxu0 %v1656
    %1960 = vmatpush.bf16.msra.mxu0 %v1652
    %1961 = vmatpush.bf16.msra.mxu0 %v1648
    %1962 = vmatpush.bf16.msra.mxu0 %v1644
    %1963 = vmatmul.bf16.gmra.mxu0 %v1117
    %v1964 = vpop.f32.mrf.mxu0
    %v1965 = vadd.f32 %v1252, %v1964
    %v1966 = vpop.f32.mrf.mxu0
    %v1967 = vadd.f32 %v1252, %v1966
    %1968 = vdwg.mxu0
    %1969 = vmatpush.bf16.msra.mxu0 %v1704
    %1970 = vmatpush.bf16.msra.mxu0 %v1700
    %1971 = vmatpush.bf16.msra.mxu0 %v1696
    %1972 = vmatpush.bf16.msra.mxu0 %v1692
    %1973 = vmatpush.bf16.msra.mxu0 %v1688
    %1974 = vmatpush.bf16.msra.mxu0 %v1684
    %1975 = vmatpush.bf16.msra.mxu0 %v1680
    %1976 = vmatpush.bf16.msra.mxu0 %v1676
    %1977 = vmatmul.bf16.gmra.mxu0 %v1118
    %v1978 = vpop.f32.mrf.mxu0
    %v1979 = vadd.f32 %v1965, %v1978
    %v1980 = vpop.f32.mrf.mxu0
    %v1981 = vadd.f32 %v1967, %v1980
    %1982 = vdwg.mxu0
    %1983 = vmatpush.bf16.msra.mxu0 %v1736
    %1984 = vmatpush.bf16.msra.mxu0 %v1732
    %1985 = vmatpush.bf16.msra.mxu0 %v1728
    %1986 = vmatpush.bf16.msra.mxu0 %v1724
    %1987 = vmatpush.bf16.msra.mxu0 %v1720
    %1988 = vmatpush.bf16.msra.mxu0 %v1716
    %1989 = vmatpush.bf16.msra.mxu0 %v1712
    %1990 = vmatpush.bf16.msra.mxu0 %v1708
    %1991 = vmatmul.bf16.gmra.mxu0 %v1119
    %v1992 = vpop.f32.mrf.mxu0
    %v1993 = vadd.f32 %v1979, %v1992
    %v1994 = vpop.f32.mrf.mxu0
    %v1995 = vadd.f32 %v1981, %v1994
    %1996 = vdwg.mxu0
    %1997 = vmatpush.bf16.msra.mxu0 %v1768
    %1998 = vmatpush.bf16.msra.mxu0 %v1764
    %1999 = vmatpush.bf16.msra.mxu0 %v1760
    %2000 = vmatpush.bf16.msra.mxu0 %v1756
    %2001 = vmatpush.bf16.msra.mxu0 %v1752
    %2002 = vmatpush.bf16.msra.mxu0 %v1748
    %2003 = vmatpush.bf16.msra.mxu0 %v1744
    %2004 = vmatpush.bf16.msra.mxu0 %v1740
    %2005 = vmatmul.bf16.gmra.mxu0 %v1120
    %v2006 = vpop.f32.mrf.mxu0
    %v2007 = vadd.f32 %v1993, %v2006
    %v2008 = vpop.f32.mrf.mxu0
    %v2009 = vadd.f32 %v1995, %v2008
    %2010 = vdwg.mxu0
    %2011 = vmatpush.bf16.msra.mxu0 %v1673
    %2012 = vmatpush.bf16.msra.mxu0 %v1669
    %2013 = vmatpush.bf16.msra.mxu0 %v1665
    %2014 = vmatpush.bf16.msra.mxu0 %v1661
    %2015 = vmatpush.bf16.msra.mxu0 %v1657
    %2016 = vmatpush.bf16.msra.mxu0 %v1653
    %2017 = vmatpush.bf16.msra.mxu0 %v1649
    %2018 = vmatpush.bf16.msra.mxu0 %v1645
    %2019 = vmatmul.bf16.gmra.mxu0 %v1117
    %v2020 = vpop.f32.mrf.mxu0
    %v2021 = vadd.f32 %v1253, %v2020
    %v2022 = vpop.f32.mrf.mxu0
    %v2023 = vadd.f32 %v1253, %v2022
    %2024 = vdwg.mxu0
    %2025 = vmatpush.bf16.msra.mxu0 %v1705
    %2026 = vmatpush.bf16.msra.mxu0 %v1701
    %2027 = vmatpush.bf16.msra.mxu0 %v1697
    %2028 = vmatpush.bf16.msra.mxu0 %v1693
    %2029 = vmatpush.bf16.msra.mxu0 %v1689
    %2030 = vmatpush.bf16.msra.mxu0 %v1685
    %2031 = vmatpush.bf16.msra.mxu0 %v1681
    %2032 = vmatpush.bf16.msra.mxu0 %v1677
    %2033 = vmatmul.bf16.gmra.mxu0 %v1118
    %v2034 = vpop.f32.mrf.mxu0
    %v2035 = vadd.f32 %v2021, %v2034
    %v2036 = vpop.f32.mrf.mxu0
    %v2037 = vadd.f32 %v2023, %v2036
    %2038 = vdwg.mxu0
    %2039 = vmatpush.bf16.msra.mxu0 %v1737
    %2040 = vmatpush.bf16.msra.mxu0 %v1733
    %2041 = vmatpush.bf16.msra.mxu0 %v1729
    %2042 = vmatpush.bf16.msra.mxu0 %v1725
    %2043 = vmatpush.bf16.msra.mxu0 %v1721
    %2044 = vmatpush.bf16.msra.mxu0 %v1717
    %2045 = vmatpush.bf16.msra.mxu0 %v1713
    %2046 = vmatpush.bf16.msra.mxu0 %v1709
    %2047 = vmatmul.bf16.gmra.mxu0 %v1119
    %v2048 = vpop.f32.mrf.mxu0
    %v2049 = vadd.f32 %v2035, %v2048
    %v2050 = vpop.f32.mrf.mxu0
    %v2051 = vadd.f32 %v2037, %v2050
    %2052 = vdwg.mxu0
    %2053 = vmatpush.bf16.msra.mxu0 %v1769
    %2054 = vmatpush.bf16.msra.mxu0 %v1765
    %2055 = vmatpush.bf16.msra.mxu0 %v1761
    %2056 = vmatpush.bf16.msra.mxu0 %v1757
    %2057 = vmatpush.bf16.msra.mxu0 %v1753
    %2058 = vmatpush.bf16.msra.mxu0 %v1749
    %2059 = vmatpush.bf16.msra.mxu0 %v1745
    %2060 = vmatpush.bf16.msra.mxu0 %v1741
    %2061 = vmatmul.bf16.gmra.mxu0 %v1120
    %v2062 = vpop.f32.mrf.mxu0
    %v2063 = vadd.f32 %v2049, %v2062
    %v2064 = vpop.f32.mrf.mxu0
    %v2065 = vadd.f32 %v2051, %v2064
    %2066 = vdwg.mxu0
    %2067 = vmatpush.bf16.msra.mxu0 %v1674
    %2068 = vmatpush.bf16.msra.mxu0 %v1670
    %2069 = vmatpush.bf16.msra.mxu0 %v1666
    %2070 = vmatpush.bf16.msra.mxu0 %v1662
    %2071 = vmatpush.bf16.msra.mxu0 %v1658
    %2072 = vmatpush.bf16.msra.mxu0 %v1654
    %2073 = vmatpush.bf16.msra.mxu0 %v1650
    %2074 = vmatpush.bf16.msra.mxu0 %v1646
    %2075 = vmatmul.bf16.gmra.mxu0 %v1117
    %v2076 = vpop.f32.mrf.mxu0
    %v2077 = vadd.f32 %v1254, %v2076
    %v2078 = vpop.f32.mrf.mxu0
    %v2079 = vadd.f32 %v1254, %v2078
    %2080 = vdwg.mxu0
    %2081 = vmatpush.bf16.msra.mxu0 %v1706
    %2082 = vmatpush.bf16.msra.mxu0 %v1702
    %2083 = vmatpush.bf16.msra.mxu0 %v1698
    %2084 = vmatpush.bf16.msra.mxu0 %v1694
    %2085 = vmatpush.bf16.msra.mxu0 %v1690
    %2086 = vmatpush.bf16.msra.mxu0 %v1686
    %2087 = vmatpush.bf16.msra.mxu0 %v1682
    %2088 = vmatpush.bf16.msra.mxu0 %v1678
    %2089 = vmatmul.bf16.gmra.mxu0 %v1118
    %v2090 = vpop.f32.mrf.mxu0
    %v2091 = vadd.f32 %v2077, %v2090
    %v2092 = vpop.f32.mrf.mxu0
    %v2093 = vadd.f32 %v2079, %v2092
    %2094 = vdwg.mxu0
    %2095 = vmatpush.bf16.msra.mxu0 %v1738
    %2096 = vmatpush.bf16.msra.mxu0 %v1734
    %2097 = vmatpush.bf16.msra.mxu0 %v1730
    %2098 = vmatpush.bf16.msra.mxu0 %v1726
    %2099 = vmatpush.bf16.msra.mxu0 %v1722
    %2100 = vmatpush.bf16.msra.mxu0 %v1718
    %2101 = vmatpush.bf16.msra.mxu0 %v1714
    %2102 = vmatpush.bf16.msra.mxu0 %v1710
    %2103 = vmatmul.bf16.gmra.mxu0 %v1119
    %v2104 = vpop.f32.mrf.mxu0
    %v2105 = vadd.f32 %v2091, %v2104
    %v2106 = vpop.f32.mrf.mxu0
    %v2107 = vadd.f32 %v2093, %v2106
    %2108 = vdwg.mxu0
    %2109 = vmatpush.bf16.msra.mxu0 %v1770
    %2110 = vmatpush.bf16.msra.mxu0 %v1766
    %2111 = vmatpush.bf16.msra.mxu0 %v1762
    %2112 = vmatpush.bf16.msra.mxu0 %v1758
    %2113 = vmatpush.bf16.msra.mxu0 %v1754
    %2114 = vmatpush.bf16.msra.mxu0 %v1750
    %2115 = vmatpush.bf16.msra.mxu0 %v1746
    %2116 = vmatpush.bf16.msra.mxu0 %v1742
    %2117 = vmatmul.bf16.gmra.mxu0 %v1120
    %v2118 = vpop.f32.mrf.mxu0
    %v2119 = vadd.f32 %v2105, %v2118
    %v2120 = vpop.f32.mrf.mxu0
    %v2121 = vadd.f32 %v2107, %v2120
    %2122 = vdwg.mxu0
    %v2123 = vtanh.pop %v1951
    %v2124 = vtanh.pop %v2007
    %v2125 = vtanh.pop %v2063
    %v2126 = vtanh.pop %v2119
    %v2127 = vtanh.pop %v1953
    %v2128 = vtanh.pop %v2009
    %v2129 = vtanh.pop %v2065
    %v2130 = vtanh.pop %v2121
    %2131 = vst [vmem:[#allocation11] sm:$0xff] %v2123
    %2132 = vst [vmem:[#allocation11 + $0x8] sm:$0xff] %v2124
    %2133 = vst [vmem:[#allocation11 + $0x10] sm:$0xff] %v2125
    %2134 = vst [vmem:[#allocation11 + $0x18] sm:$0xff] %v2126
    %2135 = vst [vmem:[#allocation11 + $0x20] sm:$0xff] %v2127
    %2136 = vst [vmem:[#allocation11 + $0x28] sm:$0xff] %v2128
    %2137 = vst [vmem:[#allocation11 + $0x30] sm:$0xff] %v2129
    %2138 = vst [vmem:[#allocation11 + $0x38] sm:$0xff] %v2130
    // Predicated region
    $region42: #{tpu_custom_call.1} parent=1 // pred_check
      _
    $region43: #{tpu_custom_call.1} parent=1 // pred_check_branch
      %2140 = sbr.rel (0) target = $region45
    $region44: #{tpu_custom_call.1} parent=1 // pred_region
      %2142 = vsyncadd [#allocation4], 0
      %s2143 = sshll.u32 [#allocation11], 4
      %s2144 = int_to_ptr.vmem [resolvable:$true] %s2143
      %s2145 = sshll.u32 %s5, 4
      %s2146 = int_to_ptr.hbm [resolvable:$true] %s2145
      %2151 = dma.vmem_to_hbm [thread:$0]  %s2144, 1024, %s2146, [#allocation4], 512, 512, 32
    $region45: #{tpu_custom_call.1} parent=1 // pred_fallthru
      _
    // Predicated region
    $region46: #{tpu_custom_call.1} parent=1 // pred_check
      _
    $region47: #{tpu_custom_call.1} parent=1 // pred_check_branch
      %2153 = sbr.rel (0) target = $region49
    $region48: #{tpu_custom_call.1} parent=1 // pred_region
      %2155 = dma.done [#allocation4], 1024
    $region49: #{tpu_custom_call.1} parent=1 // pred_fallthru
      _
    %2156 = vsyncpa [#allocation3], 1
    %2157 = vsyncpa [#allocation6], 1
    %2158 = vsyncpa [#allocation9], 1
    %2159 = vsyncpa [#allocation4], 1

</llo_original>
